<compile_context>
chip_gen: v7x
topology: tpu7x:2x2x1
jax: 0.10.0
libtpu: 0.0.40
codegen_flags: <defaults>
</compile_context>

<pallas_src>
import functools

import jax
import jax.numpy as jnp
import numpy as np
from jax import lax
from jax.experimental import pallas as pl
from jax.experimental.pallas import tpu as pltpu

# Architecture constants (defaults of CreateBase / EEGShallowClassifier).
N_FILTERS_TIME = 40
N_FILTERS_SPAT = 40
FILTER_TIME_LEN = 25
POOL_LEN = 75
POOL_STRIDE = 15
REDUCTION_SIZE = 50
BN_EPS = 1e-5
SAFE_LOG_EPS = 1e-6


def _eeg_kernel(x_ref, w2_ref, shift_ref, pool_ref, wrc_ref, brc_ref, out_ref,
                *, b_tile, t2):
    """One block of b_tile samples per grid step.

    x_ref:     (b_tile*t1, K*C)        im2col'd input rows (f32, cast to bf16 here)
    w2_ref:    (K*C, F)                fused conv_time+conv_spat (*BN scale), bf16
    shift_ref: (1, F)                  folded conv-bias + eval-mode BatchNorm (f32)
    pool_ref:  (t2*b_tile, b_tile*t1)  block-diagonal AvgPool(75,15) matrix (f32)
    wrc_ref:   (t2*F, N)               feature_reduction @ classifier (fused, f32)
    brc_ref:   (1, N)                  folded reduction/classifier bias (f32)
    out_ref:   (b_tile, N)             per-sample log-softmax
    """
    # --- fused conv_time + conv_spat (+ BN scale): one bf16 MXU matmul, f32 acc ---
    x = x_ref[...].astype(jnp.bfloat16)                          # (Bt*t1, K*C)
    z = jnp.dot(x, w2_ref[...],
                preferred_element_type=jnp.float32)              # (Bt*t1, F)

    # --- remaining BatchNorm/bias shift, then square nonlinearity (f32, VPU) ---
    z = z + shift_ref[...]
    s = z * z

    # --- AvgPool(75, 15) per sample as a single (block-diagonal) matmul ---
    # Row ordering is window-major: row p*b_tile + i = window p of sample i.
    pooled = jnp.dot(pool_ref[...], s,
                     preferred_element_type=jnp.float32)         # (t2*Bt, F)
    plog = jnp.log(jnp.maximum(pooled, SAFE_LOG_EPS))

    # --- regroup to (Bt, t2*F): per-sample flattened pooled-log features ---
    feat_in = jnp.concatenate(
        [plog[p * b_tile:(p + 1) * b_tile, :] for p in range(t2)], axis=1)

    # TODO(synk): Dropout(p=0.5) is identity in eval mode; train-mode dropout and
    # train-mode BatchNorm batch statistics are not implemented.

    # --- fused feature_reduction + classifier: one matmul, then log-softmax ---
    logits = jnp.dot(feat_in, wrc_ref[...],
                     preferred_element_type=jnp.float32) + brc_ref[...]  # (Bt, N)
    m = jnp.max(logits, axis=-1, keepdims=True)
    lse = jnp.log(jnp.sum(jnp.exp(logits - m), axis=-1, keepdims=True)) + m
    out_ref[...] = logits - lse


def _build_pool_matrix(b_tile, t1, t2):
    """Block-diagonal AvgPool(75,15) matrix, window-major rows (p*b_tile + i)."""
    P = np.zeros((t2 * b_tile, b_tile * t1), np.float32)
    for p in range(t2):
        start = p * POOL_STRIDE
        for i in range(b_tile):
            P[p * b_tile + i, i * t1 + start: i * t1 + start + POOL_LEN] = 1.0 / POOL_LEN
    return jnp.asarray(P)


def _fuse_params(p, t2):
    """Fold the whole parameter set into the five kernel operands."""
    Wt = p["conv_time_w"][:, 0, :, 0]                 # (Ft, K)
    bt = p["conv_time_b"]                             # (Ft,)
    Ws = p["conv_spat_w"][:, :, 0, :]                 # (Fs, Ft, C)
    w2 = jnp.einsum("fgc,gk->kcf", Ws, Wt)            # (K, C, Fs)
    K, C, F = w2.shape
    w2_flat = w2.reshape(K * C, F)                    # row index k*C + c
    bias2 = jnp.einsum("fgc,g->f", Ws, bt)            # (Fs,)

    # Eval-mode BatchNorm folded: scale into the matmul weights, shift as an add.
    scale = p["bn_gamma"] / jnp.sqrt(p["bn_var"] + BN_EPS)
    shift = (bias2 - p["bn_mean"]) * scale + p["bn_beta"]
    w2_scaled = w2_flat * scale[None, :]

    # feature_reduction (t2*F -> R) and classifier (R -> N) fused (Dropout = id).
    wr = jnp.transpose(p["red_w"][:, :, :, 0], (2, 1, 0))        # (t2, Fs, R)
    wr_flat = wr.reshape(t2 * F, wr.shape[2])                    # row index p*F + f
    br = p["red_b"][None, :]                                     # (1, R)
    wc = p["cls_w"][:, :, 0, 0].T                                # (R, N)
    bc = p["cls_b"][None, :]                                     # (1, N)
    wrc = jnp.dot(wr_flat, wc, precision=lax.Precision.HIGHEST)  # (t2*F, N)
    brc = jnp.dot(br, wc, precision=lax.Precision.HIGHEST) + bc  # (1, N)
    return w2_scaled, shift[None, :], wrc, brc


def eeg_shallow_forward(x_nchw, params, *, b_tile=8):
    """x_nchw: (B, in_chans, T, 1) float32 (PyTorch NCHW).  Returns (B, n_classes)."""
    B, C, T, W = x_nchw.shape
    assert W == 1
    t1 = T - FILTER_TIME_LEN + 1
    t2 = (t1 - POOL_LEN) // POOL_STRIDE + 1
    assert t2 >= 1, "input_time_length too short for the shallow net"

    w2_scaled, bn_shift, wrc, brc = _fuse_params(params, t2)
    n_classes = wrc.shape[-1]
    KC = FILTER_TIME_LEN * C

    # Pad batch to a multiple of b_tile (padded samples sliced off at the end).
    b_pad = ((B + b_tile - 1) // b_tile) * b_tile
    x = x_nchw.astype(jnp.float32)
    if b_pad != B:
        x = jnp.pad(x, ((0, b_pad - B), (0, 0), (0, 0), (0, 0)))

    # _transpose_time_to_spat + im2col: lane-dense (B_pad*t1, K*C) input rows,
    # row i*t1 + t = sample i / output time t, column k*C + c.
    x_tc = jnp.transpose(x[:, :, :, 0], (0, 2, 1))               # (B_pad, T, C)
    x_unf = jnp.concatenate(
        [x_tc[:, k:k + t1, :] for k in range(FILTER_TIME_LEN)], axis=-1)
    x_unf = x_unf.reshape(b_pad * t1, KC)                        # (B_pad*t1, K*C) f32

    pool_mat = _build_pool_matrix(b_tile, t1, t2)

    weights = (w2_scaled.astype(jnp.bfloat16), bn_shift, pool_mat, wrc, brc)

    kernel = functools.partial(_eeg_kernel, b_tile=b_tile, t2=t2)
    grid = (b_pad // b_tile,)

    out = pl.pallas_call(
        kernel,
        out_shape=jax.ShapeDtypeStruct((b_pad, n_classes), jnp.float32),
        grid=grid,
        in_specs=[pl.BlockSpec((b_tile * t1, KC), lambda b: (b, 0))]
                 + [pl.BlockSpec(w.shape, lambda b: (0, 0)) for w in weights],
        out_specs=pl.BlockSpec((b_tile, n_classes), lambda b: (b, 0)),
        compiler_params=pltpu.CompilerParams(
            dimension_semantics=("parallel",)),
    )(x_unf, *weights)
    return out[:B]


def init_params(key, in_chans, n_classes, t2):
    """Deterministic synthetic parameters with the exact PyTorch shapes."""
    ks = jax.random.split(key, 6)

    def xavier(k, shape):  # Conv2d weight (out, in, kh, kw), gain=1
        fan_in = shape[1] * shape[2] * shape[3]
        fan_out = shape[0] * shape[2] * shape[3]
        a = (6.0 / (fan_in + fan_out)) ** 0.5
        return jax.random.uniform(k, shape, jnp.float32, -a, a)

    p = {}
    p["conv_time_w"] = xavier(ks[0], (N_FILTERS_TIME, 1, FILTER_TIME_LEN, 1))
    p["conv_time_b"] = jnp.zeros((N_FILTERS_TIME,), jnp.float32)
    p["conv_spat_w"] = xavier(ks[1], (N_FILTERS_SPAT, N_FILTERS_TIME, 1, in_chans))
    # BatchNorm2d (affine=True) eval-mode running stats, deterministic.
    p["bn_gamma"] = jnp.ones((N_FILTERS_SPAT,), jnp.float32)
    p["bn_beta"] = jnp.zeros((N_FILTERS_SPAT,), jnp.float32)
    p["bn_mean"] = 0.01 * jax.random.normal(ks[2], (N_FILTERS_SPAT,), jnp.float32)
    p["bn_var"] = 1.0 + 0.1 * jax.random.uniform(ks[3], (N_FILTERS_SPAT,), jnp.float32)
    # feature_reduction: Conv2d(40, 50, (t2, 1), bias=True)
    p["red_w"] = xavier(ks[4], (REDUCTION_SIZE, N_FILTERS_SPAT, t2, 1))
    p["red_b"] = jnp.zeros((REDUCTION_SIZE,), jnp.float32)
    # classifier conv_class_s: Conv2d(50, n_classes, (1, 1), bias=True)
    p["cls_w"] = xavier(ks[5], (n_classes, REDUCTION_SIZE, 1, 1))
    p["cls_b"] = jnp.zeros((n_classes,), jnp.float32)
    return p


def reference_forward(x, p):
    """Plain-JAX reference of the PyTorch forward (eval mode), unfused."""
    dn = ("NCHW", "OIHW", "NCHW")
    prec = lax.Precision.HIGHEST
    y = jnp.transpose(x, (0, 3, 2, 1))                       # (B, 1, T, C)
    y = lax.conv_general_dilated(y, p["conv_time_w"], (1, 1), "VALID",
                                 dimension_numbers=dn, precision=prec)
    y = y + p["conv_time_b"][None, :, None, None]
    y = lax.conv_general_dilated(y, p["conv_spat_w"], (1, 1), "VALID",
                                 dimension_numbers=dn, precision=prec)
    scale = p["bn_gamma"] / jnp.sqrt(p["bn_var"] + BN_EPS)
    y = (y - p["bn_mean"][None, :, None, None]) * scale[None, :, None, None] \
        + p["bn_beta"][None, :, None, None]
    y = y * y
    y = lax.reduce_window(y, 0.0, lax.add, (1, 1, POOL_LEN, 1),
                          (1, 1, POOL_STRIDE, 1), "VALID") / POOL_LEN
    y = jnp.log(jnp.maximum(y, SAFE_LOG_EPS))
    y = lax.conv_general_dilated(y, p["red_w"], (1, 1), "VALID",
                                 dimension_numbers=dn, precision=prec)
    y = y + p["red_b"][None, :, None, None]
    y = lax.conv_general_dilated(y, p["cls_w"], (1, 1), "VALID",
                                 dimension_numbers=dn, precision=prec)
    y = y + p["cls_b"][None, :, None, None]
    y = jax.nn.log_softmax(y, axis=1)
    return y[:, :, 0, 0]


if __name__ == "__main__":
    # Smallest shapes consistent with the architecture:
    # time conv needs T >= 25, pooling needs (T - 24) >= 75  =>  T >= 99.
    # B=12 with b_tile=8 exercises both batch blocking (grid of 2) and padding.
    B, in_chans, n_classes, T = 12, 4, 4, 129
    t1 = T - FILTER_TIME_LEN + 1
    t2 = (t1 - POOL_LEN) // POOL_STRIDE + 1

    key = jax.random.PRNGKey(0)
    kx, kp = jax.random.split(key)
    x = jax.random.normal(kx, (B, in_chans, T, 1), jnp.float32)   # PyTorch NCHW
    params = init_params(kp, in_chans, n_classes, t2)

    out = eeg_shallow_forward(x, params, b_tile=8)
    out = jax.block_until_ready(out)

    ref = reference_forward(x, params)
    assert out.shape == (B, n_classes)
    np.testing.assert_allclose(np.asarray(out), np.asarray(ref),
                               rtol=5e-2, atol=5e-2)
    print("KERNEL_OK")
</pallas_src>

<mosaic_0001>
module attributes {stable_mosaic.version = 11 : i64} {
  func.func @_eeg_kernel(%arg0: i32, %arg1: memref<840x100xf32, #tpu.memory_space<vmem>>, %arg2: memref<100x40xbf16, #tpu.memory_space<vmem>>, %arg3: memref<1x40xf32, #tpu.memory_space<vmem>>, %arg4: memref<24x840xf32, #tpu.memory_space<vmem>>, %arg5: memref<120x4xf32, #tpu.memory_space<vmem>>, %arg6: memref<1x4xf32, #tpu.memory_space<vmem>>, %arg7: memref<8x4xf32, #tpu.memory_space<vmem>>) attributes {dimension_semantics = [#tpu.dimension_semantics<parallel>], iteration_bounds = array<i64: 2>, scalar_prefetch = 0 : i64, scratch_operands = 0 : i64, tpu.core_type = #tpu.core_type<tc>, window_params = [{transform_indices = @transform_0, window_bounds = array<i64: 840, 100>}, {pipeline_mode = #tpu.pipeline_mode<synchronous>, transform_indices = @transform_1, window_bounds = array<i64: 100, 40>}, {pipeline_mode = #tpu.pipeline_mode<synchronous>, transform_indices = @transform_2, window_bounds = array<i64: 1, 40>}, {pipeline_mode = #tpu.pipeline_mode<synchronous>, transform_indices = @transform_3, window_bounds = array<i64: 24, 840>}, {pipeline_mode = #tpu.pipeline_mode<synchronous>, transform_indices = @transform_4, window_bounds = array<i64: 120, 4>}, {pipeline_mode = #tpu.pipeline_mode<synchronous>, transform_indices = @transform_5, window_bounds = array<i64: 1, 4>}, {transform_indices = @transform_6, window_bounds = array<i64: 8, 4>}]} {
    %c0 = arith.constant 0 : index
    %c0_0 = arith.constant 0 : index
    %0 = vector.load %arg1[%c0, %c0_0] : memref<840x100xf32, #tpu.memory_space<vmem>>, vector<840x100xf32>
    %1 = arith.truncf %0 : vector<840x100xf32> to vector<840x100xbf16>
    %c0_1 = arith.constant 0 : index
    %c0_2 = arith.constant 0 : index
    %2 = vector.load %arg2[%c0_1, %c0_2] : memref<100x40xbf16, #tpu.memory_space<vmem>>, vector<100x40xbf16>
    %cst = arith.constant dense<0.000000e+00> : vector<840x40xf32>
    %3 = tpu.matmul %1, %2, %cst {dimension_numbers = #tpu.dot_dimension_numbers<[1], [0], [0], [1], [0, 0, 1, 1], [], []>} : vector<840x100xbf16>, vector<100x40xbf16>, vector<840x40xf32> -> vector<840x40xf32>
    %c0_3 = arith.constant 0 : index
    %c0_4 = arith.constant 0 : index
    %4 = vector.load %arg3[%c0_3, %c0_4] : memref<1x40xf32, #tpu.memory_space<vmem>>, vector<1x40xf32>
    %5 = vector.broadcast %4 : vector<1x40xf32> to vector<840x40xf32>
    %6 = arith.addf %3, %5 : vector<840x40xf32>
    %7 = arith.mulf %6, %6 : vector<840x40xf32>
    %c0_5 = arith.constant 0 : index
    %c0_6 = arith.constant 0 : index
    %8 = vector.load %arg4[%c0_5, %c0_6] : memref<24x840xf32, #tpu.memory_space<vmem>>, vector<24x840xf32>
    %cst_7 = arith.constant dense<0.000000e+00> : vector<24x40xf32>
    %9 = tpu.matmul %8, %7, %cst_7 {dimension_numbers = #tpu.dot_dimension_numbers<[1], [0], [0], [1], [0, 0, 1, 1], [], []>} : vector<24x840xf32>, vector<840x40xf32>, vector<24x40xf32> -> vector<24x40xf32>
    %cst_8 = arith.constant 9.99999997E-7 : f32
    %10 = vector.broadcast %cst_8 : f32 to vector<24x40xf32>
    %11 = arith.maximumf %9, %10 : vector<24x40xf32>
    %12 = math.log %11 : vector<24x40xf32>
    %13 = vector.extract_strided_slice %12 {offsets = [0, 0], sizes = [8, 40], strides = [1, 1]} : vector<24x40xf32> to vector<8x40xf32>
    %14 = vector.extract_strided_slice %12 {offsets = [8, 0], sizes = [8, 40], strides = [1, 1]} : vector<24x40xf32> to vector<8x40xf32>
    %15 = vector.extract_strided_slice %12 {offsets = [16, 0], sizes = [8, 40], strides = [1, 1]} : vector<24x40xf32> to vector<8x40xf32>
    %16 = tpu.concatenate %13, %14, %15 in 1 : vector<8x40xf32>, vector<8x40xf32>, vector<8x40xf32> -> vector<8x120xf32>
    %c0_9 = arith.constant 0 : index
    %c0_10 = arith.constant 0 : index
    %17 = vector.load %arg5[%c0_9, %c0_10] : memref<120x4xf32, #tpu.memory_space<vmem>>, vector<120x4xf32>
    %cst_11 = arith.constant dense<0.000000e+00> : vector<8x4xf32>
    %18 = tpu.matmul %16, %17, %cst_11 {dimension_numbers = #tpu.dot_dimension_numbers<[1], [0], [0], [1], [0, 0, 1, 1], [], []>} : vector<8x120xf32>, vector<120x4xf32>, vector<8x4xf32> -> vector<8x4xf32>
    %c0_12 = arith.constant 0 : index
    %c0_13 = arith.constant 0 : index
    %19 = vector.load %arg6[%c0_12, %c0_13] : memref<1x4xf32, #tpu.memory_space<vmem>>, vector<1x4xf32>
    %20 = vector.broadcast %19 : vector<1x4xf32> to vector<8x4xf32>
    %21 = arith.addf %18, %20 : vector<8x4xf32>
    %cst_14 = arith.constant dense<0xFF800000> : vector<8xf32>
    %22 = vector.multi_reduction <maximumf>, %21, %cst_14 [1] : vector<8x4xf32> to vector<8xf32>
    %23 = vector.shape_cast %22 : vector<8xf32> to vector<8x1xf32>
    %24 = vector.broadcast %23 : vector<8x1xf32> to vector<8x4xf32>
    %25 = arith.subf %21, %24 : vector<8x4xf32>
    %26 = math.exp %25 : vector<8x4xf32>
    %cst_15 = arith.constant dense<0.000000e+00> : vector<8xf32>
    %27 = vector.multi_reduction <add>, %26, %cst_15 [1] : vector<8x4xf32> to vector<8xf32>
    %28 = vector.shape_cast %27 : vector<8xf32> to vector<8x1xf32>
    %29 = math.log %28 : vector<8x1xf32>
    %30 = arith.addf %29, %23 : vector<8x1xf32>
    %31 = vector.broadcast %30 : vector<8x1xf32> to vector<8x4xf32>
    %32 = arith.subf %21, %31 : vector<8x4xf32>
    %c0_16 = arith.constant 0 : index
    %c0_17 = arith.constant 0 : index
    %33 = vector.load %arg7[%c0_16, %c0_17] : memref<8x4xf32, #tpu.memory_space<vmem>>, vector<8x4xf32>
    tpu.vector_store %arg7[%c0_16, %c0_17], %32 {strides = array<i32>} : memref<8x4xf32, #tpu.memory_space<vmem>>, vector<8x4xf32>,
    return
  }
  func.func @transform_0(%arg0: i32) -> (i32, i32) {
    %c0_i32 = arith.constant 0 : i32
    %c0_i32_0 = arith.constant 0 : i32
    return %arg0, %c0_i32 : i32, i32
  }
  func.func @transform_1(%arg0: i32) -> (i32, i32) {
    %c0_i32 = arith.constant 0 : i32
    %c0_i32_0 = arith.constant 0 : i32
    %c0_i32_1 = arith.constant 0 : i32
    return %c0_i32, %c0_i32_0 : i32, i32
  }
  func.func @transform_2(%arg0: i32) -> (i32, i32) {
    %c0_i32 = arith.constant 0 : i32
    %c0_i32_0 = arith.constant 0 : i32
    %c0_i32_1 = arith.constant 0 : i32
    return %c0_i32, %c0_i32_0 : i32, i32
  }
  func.func @transform_3(%arg0: i32) -> (i32, i32) {
    %c0_i32 = arith.constant 0 : i32
    %c0_i32_0 = arith.constant 0 : i32
    %c0_i32_1 = arith.constant 0 : i32
    return %c0_i32, %c0_i32_0 : i32, i32
  }
  func.func @transform_4(%arg0: i32) -> (i32, i32) {
    %c0_i32 = arith.constant 0 : i32
    %c0_i32_0 = arith.constant 0 : i32
    %c0_i32_1 = arith.constant 0 : i32
    return %c0_i32, %c0_i32_0 : i32, i32
  }
  func.func @transform_5(%arg0: i32) -> (i32, i32) {
    %c0_i32 = arith.constant 0 : i32
    %c0_i32_0 = arith.constant 0 : i32
    %c0_i32_1 = arith.constant 0 : i32
    return %c0_i32, %c0_i32_0 : i32, i32
  }
  func.func @transform_6(%arg0: i32) -> (i32, i32) {
    %c0_i32 = arith.constant 0 : i32
    %c0_i32_0 = arith.constant 0 : i32
    return %arg0, %c0_i32 : i32, i32
  }
}

</mosaic_0001>

<llo_original>
// kernel: tpu_custom_call.1
$region0: #{tpu_custom_call.1}
  #allocation0 [shape = 'u32[]', space=smem, size = 0x4, offset = 0x4, fixed_abs, tag = 'smem constant byte address 0x4 - core index']
  #allocation1 [shape = 'u32[144,128]{1,0:T(1,128)}', space=vmem, size = 0x12000, scoped, tag = 'internal scratch']
  %s0 = inlined_call_operand.vmem [shape: f32[1680,100], index: 0, kind: input, shape index: {}]
  %s1 = inlined_call_operand.vmem [shape: bf16[100,40], index: 1, kind: input, shape index: {}]
  %s2 = inlined_call_operand.vmem [shape: f32[1,40], index: 2, kind: input, shape index: {}]
  %s3 = inlined_call_operand.vmem [shape: f32[24,840], index: 3, kind: input, shape index: {}]
  %s4 = inlined_call_operand.vmem [shape: f32[120,4], index: 4, kind: input, shape index: {}]
  %s5 = inlined_call_operand.vmem [shape: f32[1,4], index: 5, kind: input, shape index: {}]
  %s6 = inlined_call_operand.vmem [shape: f32[16,4], index: 6, kind: output, shape index: {}]
  %s7 = sld [smem:[#allocation0]]
  $region57: #{tpu_custom_call.1} parent=0
    _
  %s9 = ssub.s32 1, %s7
  %s10 = scalar_select 0, %s9, %s7
  loop: start=0, step=1, limit=4
  $region2: #{tpu_custom_call.1} parent=0 // loop_pre_header
    _
  $region3: #{tpu_custom_call.1} parent=0 // loop_header
    %s12 = sphi 0, %s16
    %p13 = scmp.ge.s32.totalorder %s12, 4
    %s22 = sphi 0, %s24
    %s25 = sphi 0, %s22
    %s26 = sphi 0, %s25
    %s42 = sphi 0, %s26
    %s46 = sphi 0, %s46
    %s48 = sphi 0, %s46
    %s49 = sphi 0, %s48
    %s63 = sphi 0, %s49
    %s67 = sphi 0, %s67
    %s69 = sphi 0, %s67
    %s70 = sphi 0, %s69
    %s84 = sphi 0, %s70
    %s88 = sphi 0, %s88
    %s90 = sphi 0, %s88
    %s91 = sphi 0, %s90
    %s105 = sphi 0, %s91
    %s109 = sphi 0, %s109
    %s111 = sphi 0, %s109
    %s112 = sphi 0, %s111
    %s126 = sphi 0, %s112
    %s130 = sphi 0, %s130
    %s132 = sphi 0, %s130
    %s133 = sphi 0, %s132
    %s147 = sphi 0, %s133
    %s153 = sphi 0, %s155
    %s156 = sphi 0, %s153
    %s157 = sphi 0, %s156
    %s173 = sphi 0, %s157
  $region4: #{tpu_custom_call.1} parent=0 // loop_header_branch
    %15 = sbr.rel (%p13) target = $region8
  $region5: #{tpu_custom_call.1} parent=0 // loop_body
    %s17 = ssub.s32 %s12, 1
    %s18 = ssub.s32 %s12, 2
    %s19 = sadd.s32 %s12, 1
    %s20 = ssub.s32 %s12, %s19
    %p21 = scmp.eq.s32.totalorder %s20, 0
    %s23 = sadd.s32 %s22, 1
    %s24 = scalar_select %p21, %s22, %s23
    %p27 = pneg %p21
    %p28 = scmp.eq.s32.totalorder %s12, 1
    %p29 = por %p27, %p28
    %p30 = scmp.ne.s32.totalorder %s22, %s25
    %p31 = scmp.eq.s32.totalorder %s12, 0
    %p32 = por %p30, %p31
    %p33 = scmp.ne.s32.totalorder %s22, %s25
    %p34 = scmp.eq.s32.totalorder %s17, 1
    %p35 = por %p33, %p34
    %p36 = scmp.ne.s32.totalorder %s25, %s26
    %p37 = scmp.eq.s32.totalorder %s17, 0
    %p38 = por %p36, %p37
    %p39 = scmp.ne.s32.totalorder %s25, %s26
    %p40 = scmp.eq.s32.totalorder %s18, 1
    %p41 = por %p39, %p40
    %p43 = scmp.ne.s32.totalorder %s26, %s42
    %p44 = scmp.eq.s32.totalorder %s18, 0
    %p45 = por %p43, %p44
    %s47 = sadd.s32 %s46, 1
    %p50 = scmp.eq.s32.totalorder %s12, 1
    %p51 = scmp.ne.s32.totalorder %s46, %s48
    %p52 = scmp.eq.s32.totalorder %s12, 0
    %p53 = por %p51, %p52
    %p54 = scmp.ne.s32.totalorder %s46, %s48
    %p55 = scmp.eq.s32.totalorder %s17, 1
    %p56 = por %p54, %p55
    %p57 = scmp.ne.s32.totalorder %s48, %s49
    %p58 = scmp.eq.s32.totalorder %s17, 0
    %p59 = por %p57, %p58
    %p60 = scmp.ne.s32.totalorder %s48, %s49
    %p61 = scmp.eq.s32.totalorder %s18, 1
    %p62 = por %p60, %p61
    %p64 = scmp.ne.s32.totalorder %s49, %s63
    %p65 = scmp.eq.s32.totalorder %s18, 0
    %p66 = por %p64, %p65
    %s68 = sadd.s32 %s67, 1
    %p71 = scmp.eq.s32.totalorder %s12, 1
    %p72 = scmp.ne.s32.totalorder %s67, %s69
    %p73 = scmp.eq.s32.totalorder %s12, 0
    %p74 = por %p72, %p73
    %p75 = scmp.ne.s32.totalorder %s67, %s69
    %p76 = scmp.eq.s32.totalorder %s17, 1
    %p77 = por %p75, %p76
    %p78 = scmp.ne.s32.totalorder %s69, %s70
    %p79 = scmp.eq.s32.totalorder %s17, 0
    %p80 = por %p78, %p79
    %p81 = scmp.ne.s32.totalorder %s69, %s70
    %p82 = scmp.eq.s32.totalorder %s18, 1
    %p83 = por %p81, %p82
    %p85 = scmp.ne.s32.totalorder %s70, %s84
    %p86 = scmp.eq.s32.totalorder %s18, 0
    %p87 = por %p85, %p86
    %s89 = sadd.s32 %s88, 1
    %p92 = scmp.eq.s32.totalorder %s12, 1
    %p93 = scmp.ne.s32.totalorder %s88, %s90
    %p94 = scmp.eq.s32.totalorder %s12, 0
    %p95 = por %p93, %p94
    %p96 = scmp.ne.s32.totalorder %s88, %s90
    %p97 = scmp.eq.s32.totalorder %s17, 1
    %p98 = por %p96, %p97
    %p99 = scmp.ne.s32.totalorder %s90, %s91
    %p100 = scmp.eq.s32.totalorder %s17, 0
    %p101 = por %p99, %p100
    %p102 = scmp.ne.s32.totalorder %s90, %s91
    %p103 = scmp.eq.s32.totalorder %s18, 1
    %p104 = por %p102, %p103
    %p106 = scmp.ne.s32.totalorder %s91, %s105
    %p107 = scmp.eq.s32.totalorder %s18, 0
    %p108 = por %p106, %p107
    %s110 = sadd.s32 %s109, 1
    %p113 = scmp.eq.s32.totalorder %s12, 1
    %p114 = scmp.ne.s32.totalorder %s109, %s111
    %p115 = scmp.eq.s32.totalorder %s12, 0
    %p116 = por %p114, %p115
    %p117 = scmp.ne.s32.totalorder %s109, %s111
    %p118 = scmp.eq.s32.totalorder %s17, 1
    %p119 = por %p117, %p118
    %p120 = scmp.ne.s32.totalorder %s111, %s112
    %p121 = scmp.eq.s32.totalorder %s17, 0
    %p122 = por %p120, %p121
    %p123 = scmp.ne.s32.totalorder %s111, %s112
    %p124 = scmp.eq.s32.totalorder %s18, 1
    %p125 = por %p123, %p124
    %p127 = scmp.ne.s32.totalorder %s112, %s126
    %p128 = scmp.eq.s32.totalorder %s18, 0
    %p129 = por %p127, %p128
    %s131 = sadd.s32 %s130, 1
    %p134 = scmp.eq.s32.totalorder %s12, 1
    %p135 = scmp.ne.s32.totalorder %s130, %s132
    %p136 = scmp.eq.s32.totalorder %s12, 0
    %p137 = por %p135, %p136
    %p138 = scmp.ne.s32.totalorder %s130, %s132
    %p139 = scmp.eq.s32.totalorder %s17, 1
    %p140 = por %p138, %p139
    %p141 = scmp.ne.s32.totalorder %s132, %s133
    %p142 = scmp.eq.s32.totalorder %s17, 0
    %p143 = por %p141, %p142
    %p144 = scmp.ne.s32.totalorder %s132, %s133
    %p145 = scmp.eq.s32.totalorder %s18, 1
    %p146 = por %p144, %p145
    %p148 = scmp.ne.s32.totalorder %s133, %s147
    %p149 = scmp.eq.s32.totalorder %s18, 0
    %p150 = por %p148, %p149
    %s151 = ssub.s32 %s12, %s19
    %p152 = scmp.eq.s32.totalorder %s151, 0
    %s154 = sadd.s32 %s153, 1
    %s155 = scalar_select %p152, %s153, %s154
    %p158 = pneg %p152
    %p159 = scmp.eq.s32.totalorder %s12, 1
    %p160 = por %p158, %p159
    %p161 = scmp.ne.s32.totalorder %s153, %s156
    %p162 = scmp.eq.s32.totalorder %s12, 0
    %p163 = por %p161, %p162
    %p164 = scmp.ne.s32.totalorder %s153, %s156
    %p165 = scmp.eq.s32.totalorder %s17, 1
    %p166 = por %p164, %p165
    %p167 = scmp.ne.s32.totalorder %s156, %s157
    %p168 = scmp.eq.s32.totalorder %s17, 0
    %p169 = por %p167, %p168
    %p170 = scmp.ne.s32.totalorder %s156, %s157
    %p171 = scmp.eq.s32.totalorder %s18, 1
    %p172 = por %p170, %p171
    %p174 = scmp.ne.s32.totalorder %s157, %s173
    %p175 = scmp.eq.s32.totalorder %s18, 0
    %p176 = por %p174, %p175
    %p177 = scmp.le.s32.totalorder 1, %s12
    %p178 = scmp.lt.s32.totalorder %s12, 3
    %p179 = pnand %p177, %p178
    %p180 = pneg %p179
    // Predicated region
    $region9: #{tpu_custom_call.1} parent=5 // pred_check
      _
    $region10: #{tpu_custom_call.1} parent=5 // pred_check_branch
      %182 = sbr.rel (%p179) target = $region12
    $region11: #{tpu_custom_call.1} parent=5 // pred_region
      %s183 = ssub.s32 %s12, 1
      // Predicated region
      $region13: #{tpu_custom_call.1} parent=11 // pred_check
        %p184 = pneg %p59
      $region14: #{tpu_custom_call.1} parent=11 // pred_check_branch
        %186 = sbr.rel (%p184) target = $region16
      $region15: #{tpu_custom_call.1} parent=11 // pred_region
        _
      $region16: #{tpu_custom_call.1} parent=11 // pred_fallthru
        _
      // Predicated region
      $region17: #{tpu_custom_call.1} parent=11 // pred_check
        %p187 = pneg %p80
      $region18: #{tpu_custom_call.1} parent=11 // pred_check_branch
        %189 = sbr.rel (%p187) target = $region20
      $region19: #{tpu_custom_call.1} parent=11 // pred_region
        _
      $region20: #{tpu_custom_call.1} parent=11 // pred_fallthru
        _
      // Predicated region
      $region21: #{tpu_custom_call.1} parent=11 // pred_check
        %p190 = pneg %p101
      $region22: #{tpu_custom_call.1} parent=11 // pred_check_branch
        %192 = sbr.rel (%p190) target = $region24
      $region23: #{tpu_custom_call.1} parent=11 // pred_region
        _
      $region24: #{tpu_custom_call.1} parent=11 // pred_fallthru
        _
      // Predicated region
      $region25: #{tpu_custom_call.1} parent=11 // pred_check
        %p193 = pneg %p122
      $region26: #{tpu_custom_call.1} parent=11 // pred_check_branch
        %195 = sbr.rel (%p193) target = $region28
      $region27: #{tpu_custom_call.1} parent=11 // pred_region
        _
      $region28: #{tpu_custom_call.1} parent=11 // pred_fallthru
        _
      // Predicated region
      $region29: #{tpu_custom_call.1} parent=11 // pred_check
        %p196 = pneg %p143
      $region30: #{tpu_custom_call.1} parent=11 // pred_check_branch
        %198 = sbr.rel (%p196) target = $region32
      $region31: #{tpu_custom_call.1} parent=11 // pred_region
        _
      $region32: #{tpu_custom_call.1} parent=11 // pred_fallthru
        _
    $region12: #{tpu_custom_call.1} parent=5 // pred_fallthru
      _
    %p199 = scmp.lt.s32.totalorder %s12, 2
    // Predicated region
    $region33: #{tpu_custom_call.1} parent=5 // pred_check
      %p200 = pneg %p199
    $region34: #{tpu_custom_call.1} parent=5 // pred_check_branch
      %202 = sbr.rel (%p200) target = $region36
    $region35: #{tpu_custom_call.1} parent=5 // pred_region
      // Predicated region
      $region37: #{tpu_custom_call.1} parent=35 // pred_check
        %p203 = pneg %p32
      $region38: #{tpu_custom_call.1} parent=35 // pred_check_branch
        %205 = sbr.rel (%p203) target = $region40
      $region39: #{tpu_custom_call.1} parent=35 // pred_region
        %s206 = smul.u32 105, %s12
        %p207 = scmp.lt.s32.totalorder %s206, 209
        %s208 = scalar_select %p207, %s206, 209
        %s209 = smul.addr %s208, 8
        %s210 = scalar_lea.vmem %s0, %s209
        %s211 = smul.u32 105, %s12
      $region40: #{tpu_custom_call.1} parent=35 // pred_fallthru
        _
    $region36: #{tpu_custom_call.1} parent=5 // pred_fallthru
      _
    %p212 = scmp.le.s32.totalorder 1, %s12
    %p213 = scmp.lt.s32.totalorder %s12, 3
    %p214 = pnand %p212, %p213
    %p215 = pneg %p214
    // Predicated region
    $region41: #{tpu_custom_call.1} parent=5 // pred_check
      _
    $region42: #{tpu_custom_call.1} parent=5 // pred_check_branch
      %217 = sbr.rel (%p214) target = $region44
    $region43: #{tpu_custom_call.1} parent=5 // pred_region
      %s218 = ssub.s32 %s12, 1
      %s219 = smul.u32 105, %s17
      %p220 = scmp.lt.s32.totalorder %s219, 209
      %s221 = scalar_select %p220, %s219, 209
      %s222 = smul.addr %s221, 8
      %s223 = scalar_lea.vmem %s0, %s222
      %p224 = pneg %p38
      %p225 = pneg %p35
      %p226 = pneg %p59
      %p227 = pneg %p56
      %p228 = pneg %p80
      %p229 = pneg %p77
      %p230 = pneg %p101
      %p231 = pneg %p98
      %p232 = pneg %p122
      %p233 = pneg %p119
      %p234 = pneg %p143
      %p235 = pneg %p140
      %p236 = pneg %p169
      %p237 = pneg %p166
      %p238 = scmp.lt.s32.totalorder %s17, 1
      %s239 = scalar_select %p238, %s17, 1
      %s240 = smul.addr %s239, 8
      %s241 = scalar_lea.vmem %s6, %s240
      %s242 = smul.u32 105, %s17
      %p243 = scmp.lt.s32.totalorder %s242, 209
      %s244 = scalar_select %p243, %s242, 209
      %s245 = smul.addr %s244, 8
      %s246 = scalar_lea.vmem %s0, %s245
      %s247 = smul.u32 105, %s17
      %p248 = scmp.lt.s32.totalorder %s17, 1
      %s249 = scalar_select %p248, %s17, 1
      %s250 = smul.addr %s249, 8
      %s251 = scalar_lea.vmem %s6, %s250
      %v253 = vld [vmem:[%s246] sm:$0xff]
      %v254 = vld [vmem:[%s246 + $0x8] sm:$0xff]
      %v255 = vld [vmem:[%s246 + $0x10] sm:$0xff]
      %v256 = vld [vmem:[%s246 + $0x18] sm:$0xff]
      %v257 = vld [vmem:[%s246 + $0x20] sm:$0xff]
      %v258 = vld [vmem:[%s246 + $0x28] sm:$0xff]
      %v259 = vld [vmem:[%s246 + $0x30] sm:$0xff]
      %v260 = vld [vmem:[%s246 + $0x38] sm:$0xff]
      %v261 = vld [vmem:[%s246 + $0x40] sm:$0xff]
      %v262 = vld [vmem:[%s246 + $0x48] sm:$0xff]
      %v263 = vld [vmem:[%s246 + $0x50] sm:$0xff]
      %v264 = vld [vmem:[%s246 + $0x58] sm:$0xff]
      %v265 = vld [vmem:[%s246 + $0x60] sm:$0xff]
      %v266 = vld [vmem:[%s246 + $0x68] sm:$0xff]
      %v267 = vld [vmem:[%s246 + $0x70] sm:$0xff]
      %v268 = vld [vmem:[%s246 + $0x78] sm:$0xff]
      %v269 = vld [vmem:[%s246 + $0x80] sm:$0xff]
      %v270 = vld [vmem:[%s246 + $0x88] sm:$0xff]
      %v271 = vld [vmem:[%s246 + $0x90] sm:$0xff]
      %v272 = vld [vmem:[%s246 + $0x98] sm:$0xff]
      %v273 = vld [vmem:[%s246 + $0xa0] sm:$0xff]
      %v274 = vld [vmem:[%s246 + $0xa8] sm:$0xff]
      %v275 = vld [vmem:[%s246 + $0xb0] sm:$0xff]
      %v276 = vld [vmem:[%s246 + $0xb8] sm:$0xff]
      %v277 = vld [vmem:[%s246 + $0xc0] sm:$0xff]
      %v278 = vld [vmem:[%s246 + $0xc8] sm:$0xff]
      %v279 = vld [vmem:[%s246 + $0xd0] sm:$0xff]
      %v280 = vld [vmem:[%s246 + $0xd8] sm:$0xff]
      %v281 = vld [vmem:[%s246 + $0xe0] sm:$0xff]
      %v282 = vld [vmem:[%s246 + $0xe8] sm:$0xff]
      %v283 = vld [vmem:[%s246 + $0xf0] sm:$0xff]
      %v284 = vld [vmem:[%s246 + $0xf8] sm:$0xff]
      %v285 = vld [vmem:[%s246 + $0x100] sm:$0xff]
      %v286 = vld [vmem:[%s246 + $0x108] sm:$0xff]
      %v287 = vld [vmem:[%s246 + $0x110] sm:$0xff]
      %v288 = vld [vmem:[%s246 + $0x118] sm:$0xff]
      %v289 = vld [vmem:[%s246 + $0x120] sm:$0xff]
      %v290 = vld [vmem:[%s246 + $0x128] sm:$0xff]
      %v291 = vld [vmem:[%s246 + $0x130] sm:$0xff]
      %v292 = vld [vmem:[%s246 + $0x138] sm:$0xff]
      %v293 = vld [vmem:[%s246 + $0x140] sm:$0xff]
      %v294 = vld [vmem:[%s246 + $0x148] sm:$0xff]
      %v295 = vld [vmem:[%s246 + $0x150] sm:$0xff]
      %v296 = vld [vmem:[%s246 + $0x158] sm:$0xff]
      %v297 = vld [vmem:[%s246 + $0x160] sm:$0xff]
      %v298 = vld [vmem:[%s246 + $0x168] sm:$0xff]
      %v299 = vld [vmem:[%s246 + $0x170] sm:$0xff]
      %v300 = vld [vmem:[%s246 + $0x178] sm:$0xff]
      %v301 = vld [vmem:[%s246 + $0x180] sm:$0xff]
      %v302 = vld [vmem:[%s246 + $0x188] sm:$0xff]
      %v303 = vld [vmem:[%s246 + $0x190] sm:$0xff]
      %v304 = vld [vmem:[%s246 + $0x198] sm:$0xff]
      %v305 = vld [vmem:[%s246 + $0x1a0] sm:$0xff]
      %v306 = vld [vmem:[%s246 + $0x1a8] sm:$0xff]
      %v307 = vld [vmem:[%s246 + $0x1b0] sm:$0xff]
      %v308 = vld [vmem:[%s246 + $0x1b8] sm:$0xff]
      %v309 = vld [vmem:[%s246 + $0x1c0] sm:$0xff]
      %v310 = vld [vmem:[%s246 + $0x1c8] sm:$0xff]
      %v311 = vld [vmem:[%s246 + $0x1d0] sm:$0xff]
      %v312 = vld [vmem:[%s246 + $0x1d8] sm:$0xff]
      %v313 = vld [vmem:[%s246 + $0x1e0] sm:$0xff]
      %v314 = vld [vmem:[%s246 + $0x1e8] sm:$0xff]
      %v315 = vld [vmem:[%s246 + $0x1f0] sm:$0xff]
      %v316 = vld [vmem:[%s246 + $0x1f8] sm:$0xff]
      %v317 = vld [vmem:[%s246 + $0x200] sm:$0xff]
      %v318 = vld [vmem:[%s246 + $0x208] sm:$0xff]
      %v319 = vld [vmem:[%s246 + $0x210] sm:$0xff]
      %v320 = vld [vmem:[%s246 + $0x218] sm:$0xff]
      %v321 = vld [vmem:[%s246 + $0x220] sm:$0xff]
      %v322 = vld [vmem:[%s246 + $0x228] sm:$0xff]
      %v323 = vld [vmem:[%s246 + $0x230] sm:$0xff]
      %v324 = vld [vmem:[%s246 + $0x238] sm:$0xff]
      %v325 = vld [vmem:[%s246 + $0x240] sm:$0xff]
      %v326 = vld [vmem:[%s246 + $0x248] sm:$0xff]
      %v327 = vld [vmem:[%s246 + $0x250] sm:$0xff]
      %v328 = vld [vmem:[%s246 + $0x258] sm:$0xff]
      %v329 = vld [vmem:[%s246 + $0x260] sm:$0xff]
      %v330 = vld [vmem:[%s246 + $0x268] sm:$0xff]
      %v331 = vld [vmem:[%s246 + $0x270] sm:$0xff]
      %v332 = vld [vmem:[%s246 + $0x278] sm:$0xff]
      %v333 = vld [vmem:[%s246 + $0x280] sm:$0xff]
      %v334 = vld [vmem:[%s246 + $0x288] sm:$0xff]
      %v335 = vld [vmem:[%s246 + $0x290] sm:$0xff]
      %v336 = vld [vmem:[%s246 + $0x298] sm:$0xff]
      %v337 = vld [vmem:[%s246 + $0x2a0] sm:$0xff]
      %v338 = vld [vmem:[%s246 + $0x2a8] sm:$0xff]
      %v339 = vld [vmem:[%s246 + $0x2b0] sm:$0xff]
      %v340 = vld [vmem:[%s246 + $0x2b8] sm:$0xff]
      %v341 = vld [vmem:[%s246 + $0x2c0] sm:$0xff]
      %v342 = vld [vmem:[%s246 + $0x2c8] sm:$0xff]
      %v343 = vld [vmem:[%s246 + $0x2d0] sm:$0xff]
      %v344 = vld [vmem:[%s246 + $0x2d8] sm:$0xff]
      %v345 = vld [vmem:[%s246 + $0x2e0] sm:$0xff]
      %v346 = vld [vmem:[%s246 + $0x2e8] sm:$0xff]
      %v347 = vld [vmem:[%s246 + $0x2f0] sm:$0xff]
      %v348 = vld [vmem:[%s246 + $0x2f8] sm:$0xff]
      %v349 = vld [vmem:[%s246 + $0x300] sm:$0xff]
      %v350 = vld [vmem:[%s246 + $0x308] sm:$0xff]
      %v351 = vld [vmem:[%s246 + $0x310] sm:$0xff]
      %v352 = vld [vmem:[%s246 + $0x318] sm:$0xff]
      %v353 = vld [vmem:[%s246 + $0x320] sm:$0xff]
      %v354 = vld [vmem:[%s246 + $0x328] sm:$0xff]
      %v355 = vld [vmem:[%s246 + $0x330] sm:$0xff]
      %v356 = vld [vmem:[%s246 + $0x338] sm:$0xff]
      %v357 = vld [vmem:[%s246 + $0x340] sm:$0xff]
      %v358 = vpack.c.bf16 %v254, %v253
      %v359 = vpack.c.bf16 %v256, %v255
      %v360 = vpack.c.bf16 %v258, %v257
      %v361 = vpack.c.bf16 %v260, %v259
      %v362 = vpack.c.bf16 %v262, %v261
      %v363 = vpack.c.bf16 %v264, %v263
      %v364 = vpack.c.bf16 %v266, %v265
      %v365 = vpack.c.bf16 %v268, %v267
      %v366 = vpack.c.bf16 %v270, %v269
      %v367 = vpack.c.bf16 %v272, %v271
      %v368 = vpack.c.bf16 %v274, %v273
      %v369 = vpack.c.bf16 %v276, %v275
      %v370 = vpack.c.bf16 %v278, %v277
      %v371 = vpack.c.bf16 %v280, %v279
      %v372 = vpack.c.bf16 %v282, %v281
      %v373 = vpack.c.bf16 %v284, %v283
      %v374 = vpack.c.bf16 %v286, %v285
      %v375 = vpack.c.bf16 %v288, %v287
      %v376 = vpack.c.bf16 %v290, %v289
      %v377 = vpack.c.bf16 %v292, %v291
      %v378 = vpack.c.bf16 %v294, %v293
      %v379 = vpack.c.bf16 %v296, %v295
      %v380 = vpack.c.bf16 %v298, %v297
      %v381 = vpack.c.bf16 %v300, %v299
      %v382 = vpack.c.bf16 %v302, %v301
      %v383 = vpack.c.bf16 %v304, %v303
      %v384 = vpack.c.bf16 %v306, %v305
      %v385 = vpack.c.bf16 %v308, %v307
      %v386 = vpack.c.bf16 %v310, %v309
      %v387 = vpack.c.bf16 %v312, %v311
      %v388 = vpack.c.bf16 %v314, %v313
      %v389 = vpack.c.bf16 %v316, %v315
      %v390 = vpack.c.bf16 %v318, %v317
      %v391 = vpack.c.bf16 %v320, %v319
      %v392 = vpack.c.bf16 %v322, %v321
      %v393 = vpack.c.bf16 %v324, %v323
      %v394 = vpack.c.bf16 %v326, %v325
      %v395 = vpack.c.bf16 %v328, %v327
      %v396 = vpack.c.bf16 %v330, %v329
      %v397 = vpack.c.bf16 %v332, %v331
      %v398 = vpack.c.bf16 %v334, %v333
      %v399 = vpack.c.bf16 %v336, %v335
      %v400 = vpack.c.bf16 %v338, %v337
      %v401 = vpack.c.bf16 %v340, %v339
      %v402 = vpack.c.bf16 %v342, %v341
      %v403 = vpack.c.bf16 %v344, %v343
      %v404 = vpack.c.bf16 %v346, %v345
      %v405 = vpack.c.bf16 %v348, %v347
      %v406 = vpack.c.bf16 %v350, %v349
      %v407 = vpack.c.bf16 %v352, %v351
      %v408 = vpack.c.bf16 %v354, %v353
      %v409 = vpack.c.bf16 %v356, %v355
      %v410 = vpack.c.bf16 %v357, %v357
      %v411 = vld [vmem:[%s1] sm:$0xf]
      %v412 = vld [vmem:[%s1 + $0x4] sm:$0xf]
      %v413 = vld [vmem:[%s1 + $0x8] sm:$0xf]
      %v414 = vld [vmem:[%s1 + $0xc] sm:$0xf]
      %v415 = vld [vmem:[%s1 + $0x10] sm:$0xf]
      %v416 = vld [vmem:[%s1 + $0x14] sm:$0xf]
      %v417 = vld [vmem:[%s1 + $0x18] sm:$0xf]
      %v418 = vld [vmem:[%s1 + $0x1c] sm:$0xf]
      %v419 = vld [vmem:[%s1 + $0x20] sm:$0xf]
      %v420 = vld [vmem:[%s1 + $0x24] sm:$0xf]
      %v421 = vld [vmem:[%s1 + $0x28] sm:$0xf]
      %v422 = vld [vmem:[%s1 + $0x2c] sm:$0xf]
      %v423 = vld [vmem:[%s1 + $0x30] sm:$0x3]
      %v424 = vld [vmem:[%s2] sm:$0x1]
      %v426 = vlaneseq
      %v427 = vshrl.u32 %v426, 7
      %v428 = vsub.s32 0, %v427
      %v429 = vrot.slane %v424, %v428
      %v444 = vunpack.c.l.b16 %v411
      %v445 = vunpack.c.l.b16 %v412
      %v446 = vunpack.c.l.b16 %v413
      %v447 = vunpack.c.l.b16 %v414
      %v448 = vunpack.c.l.b16 %v415
      %v449 = vunpack.c.l.b16 %v416
      %v450 = vunpack.c.l.b16 %v417
      %v451 = vunpack.c.l.b16 %v418
      %v452 = vunpack.c.l.b16 %v419
      %v453 = vunpack.c.l.b16 %v420
      %v454 = vunpack.c.l.b16 %v421
      %v455 = vunpack.c.l.b16 %v422
      %v456 = vunpack.c.l.b16 %v423
      %v457 = vpack.c.b16 %v445, %v444
      %v458 = vpack.c.b16 %v447, %v446
      %v459 = vpack.c.b16 %v449, %v448
      %v460 = vpack.c.b16 %v451, %v450
      %v461 = vpack.c.b16 %v453, %v452
      %v462 = vpack.c.b16 %v455, %v454
      %v463 = vpack.c.b16 %v456, %v456
      %vm470 = vcmask 818176
      %v472 = vsel %vm470, %v358, 0
      %v475 = vsel %vm470, %v359, 0
      %v478 = vsel %vm470, %v360, 0
      %v481 = vsel %vm470, %v361, 0
      %v484 = vsel %vm470, %v362, 0
      %v487 = vsel %vm470, %v363, 0
      %v490 = vsel %vm470, %v364, 0
      %v493 = vsel %vm470, %v365, 0
      %v496 = vsel %vm470, %v366, 0
      %v499 = vsel %vm470, %v367, 0
      %v502 = vsel %vm470, %v368, 0
      %v505 = vsel %vm470, %v369, 0
      %v508 = vsel %vm470, %v370, 0
      %v511 = vsel %vm470, %v371, 0
      %v514 = vsel %vm470, %v372, 0
      %v517 = vsel %vm470, %v373, 0
      %v520 = vsel %vm470, %v374, 0
      %v523 = vsel %vm470, %v375, 0
      %v526 = vsel %vm470, %v376, 0
      %v529 = vsel %vm470, %v377, 0
      %v532 = vsel %vm470, %v378, 0
      %v535 = vsel %vm470, %v379, 0
      %v538 = vsel %vm470, %v380, 0
      %v541 = vsel %vm470, %v381, 0
      %v544 = vsel %vm470, %v382, 0
      %v547 = vsel %vm470, %v383, 0
      %v550 = vsel %vm470, %v384, 0
      %v553 = vsel %vm470, %v385, 0
      %v556 = vsel %vm470, %v386, 0
      %v559 = vsel %vm470, %v387, 0
      %v562 = vsel %vm470, %v388, 0
      %v565 = vsel %vm470, %v389, 0
      %v568 = vsel %vm470, %v390, 0
      %v571 = vsel %vm470, %v391, 0
      %v574 = vsel %vm470, %v392, 0
      %v577 = vsel %vm470, %v393, 0
      %v580 = vsel %vm470, %v394, 0
      %v583 = vsel %vm470, %v395, 0
      %v586 = vsel %vm470, %v396, 0
      %v589 = vsel %vm470, %v397, 0
      %v592 = vsel %vm470, %v398, 0
      %v595 = vsel %vm470, %v399, 0
      %v598 = vsel %vm470, %v400, 0
      %v601 = vsel %vm470, %v401, 0
      %v604 = vsel %vm470, %v402, 0
      %v607 = vsel %vm470, %v403, 0
      %v610 = vsel %vm470, %v404, 0
      %v613 = vsel %vm470, %v405, 0
      %v616 = vsel %vm470, %v406, 0
      %v619 = vsel %vm470, %v407, 0
      %v622 = vsel %vm470, %v408, 0
      %v625 = vsel %vm470, %v409, 0
      %v628 = vsel %vm470, %v410, 0
      %vm630 = vcmask 1041408
      %v632 = vsel %vm630, %v463, 0
      %634 = vmatprep.subr.bf16.mxu0 0
      %635 = vmatpush1.bf16.msra.mxu0 %v457
      %636 = vmatprep.subr.bf16.mxu0 0
      %637 = vmatpush1.bf16.msra.mxu0 %v458
      %638 = vmatprep.subr.bf16.mxu0 0
      %639 = vmatpush1.bf16.msra.mxu0 %v459
      %640 = vmatprep.subr.bf16.mxu0 0
      %641 = vmatpush1.bf16.msra.mxu0 %v460
      %642 = vmatprep.subr.bf16.mxu0 0
      %643 = vmatpush1.bf16.msra.mxu0 %v461
      %644 = vmatprep.subr.bf16.mxu0 0
      %645 = vmatpush1.bf16.msra.mxu0 %v462
      %646 = vmatprep.subr.bf16.mxu0 0
      %647 = vmatpush1.bf16.msra.mxu0 %v632
      %648 = vmatprep.subr.bf16.mxu0 0
      %649 = vmatpush1.bf16.msra.mxu0 0
      %650 = vmatprep.subr.bf16.mxu0 0
      %651 = vmatpush1.bf16.msra.mxu0 0
      %652 = vmatprep.subr.bf16.mxu0 0
      %653 = vmatpush1.bf16.msra.mxu0 0
      %654 = vmatprep.subr.bf16.mxu0 0
      %655 = vmatpush1.bf16.msra.mxu0 0
      %656 = vmatprep.subr.bf16.mxu0 0
      %657 = vmatpush1.bf16.msra.mxu0 0
      %658 = vmatprep.subr.bf16.mxu0 0
      %659 = vmatpush1.bf16.msra.mxu0 0
      %660 = vmatprep.subr.bf16.mxu0 0
      %661 = vmatpush1.bf16.msra.mxu0 0
      %662 = vmatprep.subr.bf16.mxu0 0
      %663 = vmatpush1.bf16.msra.mxu0 0
      %664 = vmatprep.subr.bf16.mxu0 0
      %665 = vmatpush1.bf16.msra.mxu0 0
      %666 = vmatprep.mubr.bf16.mxu0 0
      %667 = vmatmul.mubr.bf16.gmra.mrb[0].mxu0 %v472
      %v668 = vpop.f32.mrb[0].mxu0
      %v669 = vadd.f32 %v429, %v668
      %v670 = vpop.f32.mrb[0].mxu0
      %v671 = vpop.f32.mrb[0].mxu0
      %v672 = vadd.f32 %v429, %v671
      %v673 = vpop.f32.mrb[0].mxu0
      %674 = vmatprep.mubr.bf16.mxu0 0
      %675 = vmatmul.mubr.bf16.gmra.mrb[0].mxu0 %v475
      %v676 = vpop.f32.mrb[0].mxu0
      %v677 = vadd.f32 %v429, %v676
      %v678 = vpop.f32.mrb[0].mxu0
      %v679 = vpop.f32.mrb[0].mxu0
      %v680 = vadd.f32 %v429, %v679
      %v681 = vpop.f32.mrb[0].mxu0
      %682 = vmatprep.mubr.bf16.mxu0 0
      %683 = vmatmul.mubr.bf16.gmra.mrb[0].mxu0 %v478
      %v684 = vpop.f32.mrb[0].mxu0
      %v685 = vadd.f32 %v429, %v684
      %v686 = vpop.f32.mrb[0].mxu0
      %v687 = vpop.f32.mrb[0].mxu0
      %v688 = vadd.f32 %v429, %v687
      %v689 = vpop.f32.mrb[0].mxu0
      %690 = vmatprep.mubr.bf16.mxu0 0
      %691 = vmatmul.mubr.bf16.gmra.mrb[0].mxu0 %v481
      %v692 = vpop.f32.mrb[0].mxu0
      %v693 = vadd.f32 %v429, %v692
      %v694 = vpop.f32.mrb[0].mxu0
      %v695 = vpop.f32.mrb[0].mxu0
      %v696 = vadd.f32 %v429, %v695
      %v697 = vpop.f32.mrb[0].mxu0
      %698 = vmatprep.mubr.bf16.mxu0 0
      %699 = vmatmul.mubr.bf16.gmra.mrb[0].mxu0 %v484
      %v700 = vpop.f32.mrb[0].mxu0
      %v701 = vadd.f32 %v429, %v700
      %v702 = vpop.f32.mrb[0].mxu0
      %v703 = vpop.f32.mrb[0].mxu0
      %v704 = vadd.f32 %v429, %v703
      %v705 = vpop.f32.mrb[0].mxu0
      %706 = vmatprep.mubr.bf16.mxu0 0
      %707 = vmatmul.mubr.bf16.gmra.mrb[0].mxu0 %v487
      %v708 = vpop.f32.mrb[0].mxu0
      %v709 = vadd.f32 %v429, %v708
      %v710 = vpop.f32.mrb[0].mxu0
      %v711 = vpop.f32.mrb[0].mxu0
      %v712 = vadd.f32 %v429, %v711
      %v713 = vpop.f32.mrb[0].mxu0
      %714 = vmatprep.mubr.bf16.mxu0 0
      %715 = vmatmul.mubr.bf16.gmra.mrb[0].mxu0 %v490
      %v716 = vpop.f32.mrb[0].mxu0
      %v717 = vadd.f32 %v429, %v716
      %v718 = vpop.f32.mrb[0].mxu0
      %v719 = vpop.f32.mrb[0].mxu0
      %v720 = vadd.f32 %v429, %v719
      %v721 = vpop.f32.mrb[0].mxu0
      %722 = vmatprep.mubr.bf16.mxu0 0
      %723 = vmatmul.mubr.bf16.gmra.mrb[0].mxu0 %v493
      %v724 = vpop.f32.mrb[0].mxu0
      %v725 = vadd.f32 %v429, %v724
      %v726 = vpop.f32.mrb[0].mxu0
      %v727 = vpop.f32.mrb[0].mxu0
      %v728 = vadd.f32 %v429, %v727
      %v729 = vpop.f32.mrb[0].mxu0
      %730 = vmatprep.mubr.bf16.mxu0 0
      %731 = vmatmul.mubr.bf16.gmra.mrb[0].mxu0 %v496
      %v732 = vpop.f32.mrb[0].mxu0
      %v733 = vadd.f32 %v429, %v732
      %v734 = vpop.f32.mrb[0].mxu0
      %v735 = vpop.f32.mrb[0].mxu0
      %v736 = vadd.f32 %v429, %v735
      %v737 = vpop.f32.mrb[0].mxu0
      %738 = vmatprep.mubr.bf16.mxu0 0
      %739 = vmatmul.mubr.bf16.gmra.mrb[0].mxu0 %v499
      %v740 = vpop.f32.mrb[0].mxu0
      %v741 = vadd.f32 %v429, %v740
      %v742 = vpop.f32.mrb[0].mxu0
      %v743 = vpop.f32.mrb[0].mxu0
      %v744 = vadd.f32 %v429, %v743
      %v745 = vpop.f32.mrb[0].mxu0
      %746 = vmatprep.mubr.bf16.mxu0 0
      %747 = vmatmul.mubr.bf16.gmra.mrb[0].mxu0 %v502
      %v748 = vpop.f32.mrb[0].mxu0
      %v749 = vadd.f32 %v429, %v748
      %v750 = vpop.f32.mrb[0].mxu0
      %v751 = vpop.f32.mrb[0].mxu0
      %v752 = vadd.f32 %v429, %v751
      %v753 = vpop.f32.mrb[0].mxu0
      %754 = vmatprep.mubr.bf16.mxu0 0
      %755 = vmatmul.mubr.bf16.gmra.mrb[0].mxu0 %v505
      %v756 = vpop.f32.mrb[0].mxu0
      %v757 = vadd.f32 %v429, %v756
      %v758 = vpop.f32.mrb[0].mxu0
      %v759 = vpop.f32.mrb[0].mxu0
      %v760 = vadd.f32 %v429, %v759
      %v761 = vpop.f32.mrb[0].mxu0
      %762 = vmatprep.mubr.bf16.mxu0 0
      %763 = vmatmul.mubr.bf16.gmra.mrb[0].mxu0 %v508
      %v764 = vpop.f32.mrb[0].mxu0
      %v765 = vadd.f32 %v429, %v764
      %v766 = vpop.f32.mrb[0].mxu0
      %v767 = vpop.f32.mrb[0].mxu0
      %v768 = vadd.f32 %v429, %v767
      %v769 = vpop.f32.mrb[0].mxu0
      %770 = vmatprep.mubr.bf16.mxu0 0
      %771 = vmatmul.mubr.bf16.gmra.mrb[0].mxu0 %v511
      %v772 = vpop.f32.mrb[0].mxu0
      %v773 = vadd.f32 %v429, %v772
      %v774 = vpop.f32.mrb[0].mxu0
      %v775 = vpop.f32.mrb[0].mxu0
      %v776 = vadd.f32 %v429, %v775
      %v777 = vpop.f32.mrb[0].mxu0
      %778 = vmatprep.mubr.bf16.mxu0 0
      %779 = vmatmul.mubr.bf16.gmra.mrb[0].mxu0 %v514
      %v780 = vpop.f32.mrb[0].mxu0
      %v781 = vadd.f32 %v429, %v780
      %v782 = vpop.f32.mrb[0].mxu0
      %v783 = vpop.f32.mrb[0].mxu0
      %v784 = vadd.f32 %v429, %v783
      %v785 = vpop.f32.mrb[0].mxu0
      %786 = vmatprep.mubr.bf16.mxu0 0
      %787 = vmatmul.mubr.bf16.gmra.mrb[0].mxu0 %v517
      %v788 = vpop.f32.mrb[0].mxu0
      %v789 = vadd.f32 %v429, %v788
      %v790 = vpop.f32.mrb[0].mxu0
      %v791 = vpop.f32.mrb[0].mxu0
      %v792 = vadd.f32 %v429, %v791
      %v793 = vpop.f32.mrb[0].mxu0
      %794 = vmatprep.mubr.bf16.mxu0 0
      %795 = vmatmul.mubr.bf16.gmra.mrb[0].mxu0 %v520
      %v796 = vpop.f32.mrb[0].mxu0
      %v797 = vadd.f32 %v429, %v796
      %v798 = vpop.f32.mrb[0].mxu0
      %v799 = vpop.f32.mrb[0].mxu0
      %v800 = vadd.f32 %v429, %v799
      %v801 = vpop.f32.mrb[0].mxu0
      %802 = vmatprep.mubr.bf16.mxu0 0
      %803 = vmatmul.mubr.bf16.gmra.mrb[0].mxu0 %v523
      %v804 = vpop.f32.mrb[0].mxu0
      %v805 = vadd.f32 %v429, %v804
      %v806 = vpop.f32.mrb[0].mxu0
      %v807 = vpop.f32.mrb[0].mxu0
      %v808 = vadd.f32 %v429, %v807
      %v809 = vpop.f32.mrb[0].mxu0
      %810 = vmatprep.mubr.bf16.mxu0 0
      %811 = vmatmul.mubr.bf16.gmra.mrb[0].mxu0 %v526
      %v812 = vpop.f32.mrb[0].mxu0
      %v813 = vadd.f32 %v429, %v812
      %v814 = vpop.f32.mrb[0].mxu0
      %v815 = vpop.f32.mrb[0].mxu0
      %v816 = vadd.f32 %v429, %v815
      %v817 = vpop.f32.mrb[0].mxu0
      %818 = vmatprep.mubr.bf16.mxu0 0
      %819 = vmatmul.mubr.bf16.gmra.mrb[0].mxu0 %v529
      %v820 = vpop.f32.mrb[0].mxu0
      %v821 = vadd.f32 %v429, %v820
      %v822 = vpop.f32.mrb[0].mxu0
      %v823 = vpop.f32.mrb[0].mxu0
      %v824 = vadd.f32 %v429, %v823
      %v825 = vpop.f32.mrb[0].mxu0
      %826 = vmatprep.mubr.bf16.mxu0 0
      %827 = vmatmul.mubr.bf16.gmra.mrb[0].mxu0 %v532
      %v828 = vpop.f32.mrb[0].mxu0
      %v829 = vadd.f32 %v429, %v828
      %v830 = vpop.f32.mrb[0].mxu0
      %v831 = vpop.f32.mrb[0].mxu0
      %v832 = vadd.f32 %v429, %v831
      %v833 = vpop.f32.mrb[0].mxu0
      %834 = vmatprep.mubr.bf16.mxu0 0
      %835 = vmatmul.mubr.bf16.gmra.mrb[0].mxu0 %v535
      %v836 = vpop.f32.mrb[0].mxu0
      %v837 = vadd.f32 %v429, %v836
      %v838 = vpop.f32.mrb[0].mxu0
      %v839 = vpop.f32.mrb[0].mxu0
      %v840 = vadd.f32 %v429, %v839
      %v841 = vpop.f32.mrb[0].mxu0
      %842 = vmatprep.mubr.bf16.mxu0 0
      %843 = vmatmul.mubr.bf16.gmra.mrb[0].mxu0 %v538
      %v844 = vpop.f32.mrb[0].mxu0
      %v845 = vadd.f32 %v429, %v844
      %v846 = vpop.f32.mrb[0].mxu0
      %v847 = vpop.f32.mrb[0].mxu0
      %v848 = vadd.f32 %v429, %v847
      %v849 = vpop.f32.mrb[0].mxu0
      %850 = vmatprep.mubr.bf16.mxu0 0
      %851 = vmatmul.mubr.bf16.gmra.mrb[0].mxu0 %v541
      %v852 = vpop.f32.mrb[0].mxu0
      %v853 = vadd.f32 %v429, %v852
      %v854 = vpop.f32.mrb[0].mxu0
      %v855 = vpop.f32.mrb[0].mxu0
      %v856 = vadd.f32 %v429, %v855
      %v857 = vpop.f32.mrb[0].mxu0
      %858 = vmatprep.mubr.bf16.mxu0 0
      %859 = vmatmul.mubr.bf16.gmra.mrb[0].mxu0 %v544
      %v860 = vpop.f32.mrb[0].mxu0
      %v861 = vadd.f32 %v429, %v860
      %v862 = vpop.f32.mrb[0].mxu0
      %v863 = vpop.f32.mrb[0].mxu0
      %v864 = vadd.f32 %v429, %v863
      %v865 = vpop.f32.mrb[0].mxu0
      %866 = vmatprep.mubr.bf16.mxu0 0
      %867 = vmatmul.mubr.bf16.gmra.mrb[0].mxu0 %v547
      %v868 = vpop.f32.mrb[0].mxu0
      %v869 = vadd.f32 %v429, %v868
      %v870 = vpop.f32.mrb[0].mxu0
      %v871 = vpop.f32.mrb[0].mxu0
      %v872 = vadd.f32 %v429, %v871
      %v873 = vpop.f32.mrb[0].mxu0
      %874 = vmatprep.mubr.bf16.mxu0 0
      %875 = vmatmul.mubr.bf16.gmra.mrb[0].mxu0 %v550
      %v876 = vpop.f32.mrb[0].mxu0
      %v877 = vadd.f32 %v429, %v876
      %v878 = vpop.f32.mrb[0].mxu0
      %v879 = vpop.f32.mrb[0].mxu0
      %v880 = vadd.f32 %v429, %v879
      %v881 = vpop.f32.mrb[0].mxu0
      %882 = vmatprep.mubr.bf16.mxu0 0
      %883 = vmatmul.mubr.bf16.gmra.mrb[0].mxu0 %v553
      %v884 = vpop.f32.mrb[0].mxu0
      %v885 = vadd.f32 %v429, %v884
      %v886 = vpop.f32.mrb[0].mxu0
      %v887 = vpop.f32.mrb[0].mxu0
      %v888 = vadd.f32 %v429, %v887
      %v889 = vpop.f32.mrb[0].mxu0
      %890 = vmatprep.mubr.bf16.mxu0 0
      %891 = vmatmul.mubr.bf16.gmra.mrb[0].mxu0 %v556
      %v892 = vpop.f32.mrb[0].mxu0
      %v893 = vadd.f32 %v429, %v892
      %v894 = vpop.f32.mrb[0].mxu0
      %v895 = vpop.f32.mrb[0].mxu0
      %v896 = vadd.f32 %v429, %v895
      %v897 = vpop.f32.mrb[0].mxu0
      %898 = vmatprep.mubr.bf16.mxu0 0
      %899 = vmatmul.mubr.bf16.gmra.mrb[0].mxu0 %v559
      %v900 = vpop.f32.mrb[0].mxu0
      %v901 = vadd.f32 %v429, %v900
      %v902 = vpop.f32.mrb[0].mxu0
      %v903 = vpop.f32.mrb[0].mxu0
      %v904 = vadd.f32 %v429, %v903
      %v905 = vpop.f32.mrb[0].mxu0
      %906 = vmatprep.mubr.bf16.mxu0 0
      %907 = vmatmul.mubr.bf16.gmra.mrb[0].mxu0 %v562
      %v908 = vpop.f32.mrb[0].mxu0
      %v909 = vadd.f32 %v429, %v908
      %v910 = vpop.f32.mrb[0].mxu0
      %v911 = vpop.f32.mrb[0].mxu0
      %v912 = vadd.f32 %v429, %v911
      %v913 = vpop.f32.mrb[0].mxu0
      %914 = vmatprep.mubr.bf16.mxu0 0
      %915 = vmatmul.mubr.bf16.gmra.mrb[0].mxu0 %v565
      %v916 = vpop.f32.mrb[0].mxu0
      %v917 = vadd.f32 %v429, %v916
      %v918 = vpop.f32.mrb[0].mxu0
      %v919 = vpop.f32.mrb[0].mxu0
      %v920 = vadd.f32 %v429, %v919
      %v921 = vpop.f32.mrb[0].mxu0
      %922 = vmatprep.mubr.bf16.mxu0 0
      %923 = vmatmul.mubr.bf16.gmra.mrb[0].mxu0 %v568
      %v924 = vpop.f32.mrb[0].mxu0
      %v925 = vadd.f32 %v429, %v924
      %v926 = vpop.f32.mrb[0].mxu0
      %v927 = vpop.f32.mrb[0].mxu0
      %v928 = vadd.f32 %v429, %v927
      %v929 = vpop.f32.mrb[0].mxu0
      %930 = vmatprep.mubr.bf16.mxu0 0
      %931 = vmatmul.mubr.bf16.gmra.mrb[0].mxu0 %v571
      %v932 = vpop.f32.mrb[0].mxu0
      %v933 = vadd.f32 %v429, %v932
      %v934 = vpop.f32.mrb[0].mxu0
      %v935 = vpop.f32.mrb[0].mxu0
      %v936 = vadd.f32 %v429, %v935
      %v937 = vpop.f32.mrb[0].mxu0
      %938 = vmatprep.mubr.bf16.mxu0 0
      %939 = vmatmul.mubr.bf16.gmra.mrb[0].mxu0 %v574
      %v940 = vpop.f32.mrb[0].mxu0
      %v941 = vadd.f32 %v429, %v940
      %v942 = vpop.f32.mrb[0].mxu0
      %v943 = vpop.f32.mrb[0].mxu0
      %v944 = vadd.f32 %v429, %v943
      %v945 = vpop.f32.mrb[0].mxu0
      %946 = vmatprep.mubr.bf16.mxu0 0
      %947 = vmatmul.mubr.bf16.gmra.mrb[0].mxu0 %v577
      %v948 = vpop.f32.mrb[0].mxu0
      %v949 = vadd.f32 %v429, %v948
      %v950 = vpop.f32.mrb[0].mxu0
      %v951 = vpop.f32.mrb[0].mxu0
      %v952 = vadd.f32 %v429, %v951
      %v953 = vpop.f32.mrb[0].mxu0
      %954 = vmatprep.mubr.bf16.mxu0 0
      %955 = vmatmul.mubr.bf16.gmra.mrb[0].mxu0 %v580
      %v956 = vpop.f32.mrb[0].mxu0
      %v957 = vadd.f32 %v429, %v956
      %v958 = vpop.f32.mrb[0].mxu0
      %v959 = vpop.f32.mrb[0].mxu0
      %v960 = vadd.f32 %v429, %v959
      %v961 = vpop.f32.mrb[0].mxu0
      %962 = vmatprep.mubr.bf16.mxu0 0
      %963 = vmatmul.mubr.bf16.gmra.mrb[0].mxu0 %v583
      %v964 = vpop.f32.mrb[0].mxu0
      %v965 = vadd.f32 %v429, %v964
      %v966 = vpop.f32.mrb[0].mxu0
      %v967 = vpop.f32.mrb[0].mxu0
      %v968 = vadd.f32 %v429, %v967
      %v969 = vpop.f32.mrb[0].mxu0
      %970 = vmatprep.mubr.bf16.mxu0 0
      %971 = vmatmul.mubr.bf16.gmra.mrb[0].mxu0 %v586
      %v972 = vpop.f32.mrb[0].mxu0
      %v973 = vadd.f32 %v429, %v972
      %v974 = vpop.f32.mrb[0].mxu0
      %v975 = vpop.f32.mrb[0].mxu0
      %v976 = vadd.f32 %v429, %v975
      %v977 = vpop.f32.mrb[0].mxu0
      %978 = vmatprep.mubr.bf16.mxu0 0
      %979 = vmatmul.mubr.bf16.gmra.mrb[0].mxu0 %v589
      %v980 = vpop.f32.mrb[0].mxu0
      %v981 = vadd.f32 %v429, %v980
      %v982 = vpop.f32.mrb[0].mxu0
      %v983 = vpop.f32.mrb[0].mxu0
      %v984 = vadd.f32 %v429, %v983
      %v985 = vpop.f32.mrb[0].mxu0
      %986 = vmatprep.mubr.bf16.mxu0 0
      %987 = vmatmul.mubr.bf16.gmra.mrb[0].mxu0 %v592
      %v988 = vpop.f32.mrb[0].mxu0
      %v989 = vadd.f32 %v429, %v988
      %v990 = vpop.f32.mrb[0].mxu0
      %v991 = vpop.f32.mrb[0].mxu0
      %v992 = vadd.f32 %v429, %v991
      %v993 = vpop.f32.mrb[0].mxu0
      %994 = vmatprep.mubr.bf16.mxu0 0
      %995 = vmatmul.mubr.bf16.gmra.mrb[0].mxu0 %v595
      %v996 = vpop.f32.mrb[0].mxu0
      %v997 = vadd.f32 %v429, %v996
      %v998 = vpop.f32.mrb[0].mxu0
      %v999 = vpop.f32.mrb[0].mxu0
      %v1000 = vadd.f32 %v429, %v999
      %v1001 = vpop.f32.mrb[0].mxu0
      %1002 = vmatprep.mubr.bf16.mxu0 0
      %1003 = vmatmul.mubr.bf16.gmra.mrb[0].mxu0 %v598
      %v1004 = vpop.f32.mrb[0].mxu0
      %v1005 = vadd.f32 %v429, %v1004
      %v1006 = vpop.f32.mrb[0].mxu0
      %v1007 = vpop.f32.mrb[0].mxu0
      %v1008 = vadd.f32 %v429, %v1007
      %v1009 = vpop.f32.mrb[0].mxu0
      %1010 = vmatprep.mubr.bf16.mxu0 0
      %1011 = vmatmul.mubr.bf16.gmra.mrb[0].mxu0 %v601
      %v1012 = vpop.f32.mrb[0].mxu0
      %v1013 = vadd.f32 %v429, %v1012
      %v1014 = vpop.f32.mrb[0].mxu0
      %v1015 = vpop.f32.mrb[0].mxu0
      %v1016 = vadd.f32 %v429, %v1015
      %v1017 = vpop.f32.mrb[0].mxu0
      %1018 = vmatprep.mubr.bf16.mxu0 0
      %1019 = vmatmul.mubr.bf16.gmra.mrb[0].mxu0 %v604
      %v1020 = vpop.f32.mrb[0].mxu0
      %v1021 = vadd.f32 %v429, %v1020
      %v1022 = vpop.f32.mrb[0].mxu0
      %v1023 = vpop.f32.mrb[0].mxu0
      %v1024 = vadd.f32 %v429, %v1023
      %v1025 = vpop.f32.mrb[0].mxu0
      %1026 = vmatprep.mubr.bf16.mxu0 0
      %1027 = vmatmul.mubr.bf16.gmra.mrb[0].mxu0 %v607
      %v1028 = vpop.f32.mrb[0].mxu0
      %v1029 = vadd.f32 %v429, %v1028
      %v1030 = vpop.f32.mrb[0].mxu0
      %v1031 = vpop.f32.mrb[0].mxu0
      %v1032 = vadd.f32 %v429, %v1031
      %v1033 = vpop.f32.mrb[0].mxu0
      %1034 = vmatprep.mubr.bf16.mxu0 0
      %1035 = vmatmul.mubr.bf16.gmra.mrb[0].mxu0 %v610
      %v1036 = vpop.f32.mrb[0].mxu0
      %v1037 = vadd.f32 %v429, %v1036
      %v1038 = vpop.f32.mrb[0].mxu0
      %v1039 = vpop.f32.mrb[0].mxu0
      %v1040 = vadd.f32 %v429, %v1039
      %v1041 = vpop.f32.mrb[0].mxu0
      %1042 = vmatprep.mubr.bf16.mxu0 0
      %1043 = vmatmul.mubr.bf16.gmra.mrb[0].mxu0 %v613
      %v1044 = vpop.f32.mrb[0].mxu0
      %v1045 = vadd.f32 %v429, %v1044
      %v1046 = vpop.f32.mrb[0].mxu0
      %v1047 = vpop.f32.mrb[0].mxu0
      %v1048 = vadd.f32 %v429, %v1047
      %v1049 = vpop.f32.mrb[0].mxu0
      %1050 = vmatprep.mubr.bf16.mxu0 0
      %1051 = vmatmul.mubr.bf16.gmra.mrb[0].mxu0 %v616
      %v1052 = vpop.f32.mrb[0].mxu0
      %v1053 = vadd.f32 %v429, %v1052
      %v1054 = vpop.f32.mrb[0].mxu0
      %v1055 = vpop.f32.mrb[0].mxu0
      %v1056 = vadd.f32 %v429, %v1055
      %v1057 = vpop.f32.mrb[0].mxu0
      %1058 = vmatprep.mubr.bf16.mxu0 0
      %1059 = vmatmul.mubr.bf16.gmra.mrb[0].mxu0 %v619
      %v1060 = vpop.f32.mrb[0].mxu0
      %v1061 = vadd.f32 %v429, %v1060
      %v1062 = vpop.f32.mrb[0].mxu0
      %v1063 = vpop.f32.mrb[0].mxu0
      %v1064 = vadd.f32 %v429, %v1063
      %v1065 = vpop.f32.mrb[0].mxu0
      %1066 = vmatprep.mubr.bf16.mxu0 0
      %1067 = vmatmul.mubr.bf16.gmra.mrb[0].mxu0 %v622
      %v1068 = vpop.f32.mrb[0].mxu0
      %v1069 = vadd.f32 %v429, %v1068
      %v1070 = vpop.f32.mrb[0].mxu0
      %v1071 = vpop.f32.mrb[0].mxu0
      %v1072 = vadd.f32 %v429, %v1071
      %v1073 = vpop.f32.mrb[0].mxu0
      %1074 = vmatprep.mubr.bf16.mxu0 0
      %1075 = vmatmul.mubr.bf16.gmra.mrb[0].mxu0 %v625
      %v1076 = vpop.f32.mrb[0].mxu0
      %v1077 = vadd.f32 %v429, %v1076
      %v1078 = vpop.f32.mrb[0].mxu0
      %v1079 = vpop.f32.mrb[0].mxu0
      %v1080 = vadd.f32 %v429, %v1079
      %v1081 = vpop.f32.mrb[0].mxu0
      %1082 = vmatprep.mubr.bf16.mxu0 0
      %1083 = vmatmul.mubr.bf16.gmra.mrb[0].mxu0 %v628
      %v1084 = vpop.f32.mrb[0].mxu0
      %v1085 = vadd.f32 %v429, %v1084
      %v1086 = vpop.f32.mrb[0].mxu0
      %v1087 = vpop.f32.mrb[0].mxu0
      %v1088 = vpop.f32.mrb[0].mxu0
      %1089 = vdwg.mxu0
      %v1090 = vmul.f32 %v669, %v669
      %v1091 = vmul.f32 %v672, %v672
      %v1092 = vmul.f32 %v677, %v677
      %v1093 = vmul.f32 %v680, %v680
      %v1094 = vmul.f32 %v685, %v685
      %v1095 = vmul.f32 %v688, %v688
      %v1096 = vmul.f32 %v693, %v693
      %v1097 = vmul.f32 %v696, %v696
      %v1098 = vmul.f32 %v701, %v701
      %v1099 = vmul.f32 %v704, %v704
      %v1100 = vmul.f32 %v709, %v709
      %v1101 = vmul.f32 %v712, %v712
      %v1102 = vmul.f32 %v717, %v717
      %v1103 = vmul.f32 %v720, %v720
      %v1104 = vmul.f32 %v725, %v725
      %v1105 = vmul.f32 %v728, %v728
      %v1106 = vmul.f32 %v733, %v733
      %v1107 = vmul.f32 %v736, %v736
      %v1108 = vmul.f32 %v741, %v741
      %v1109 = vmul.f32 %v744, %v744
      %v1110 = vmul.f32 %v749, %v749
      %v1111 = vmul.f32 %v752, %v752
      %v1112 = vmul.f32 %v757, %v757
      %v1113 = vmul.f32 %v760, %v760
      %v1114 = vmul.f32 %v765, %v765
      %v1115 = vmul.f32 %v768, %v768
      %v1116 = vmul.f32 %v773, %v773
      %v1117 = vmul.f32 %v776, %v776
      %v1118 = vmul.f32 %v781, %v781
      %v1119 = vmul.f32 %v784, %v784
      %v1120 = vmul.f32 %v789, %v789
      %v1121 = vmul.f32 %v792, %v792
      %v1122 = vmul.f32 %v797, %v797
      %v1123 = vmul.f32 %v800, %v800
      %v1124 = vmul.f32 %v805, %v805
      %v1125 = vmul.f32 %v808, %v808
      %v1126 = vmul.f32 %v813, %v813
      %v1127 = vmul.f32 %v816, %v816
      %v1128 = vmul.f32 %v821, %v821
      %v1129 = vmul.f32 %v824, %v824
      %v1130 = vmul.f32 %v829, %v829
      %v1131 = vmul.f32 %v832, %v832
      %v1132 = vmul.f32 %v837, %v837
      %v1133 = vmul.f32 %v840, %v840
      %v1134 = vmul.f32 %v845, %v845
      %v1135 = vmul.f32 %v848, %v848
      %v1136 = vmul.f32 %v853, %v853
      %v1137 = vmul.f32 %v856, %v856
      %v1138 = vmul.f32 %v861, %v861
      %v1139 = vmul.f32 %v864, %v864
      %v1140 = vmul.f32 %v869, %v869
      %v1141 = vmul.f32 %v872, %v872
      %v1142 = vmul.f32 %v877, %v877
      %v1143 = vmul.f32 %v880, %v880
      %v1144 = vmul.f32 %v885, %v885
      %v1145 = vmul.f32 %v888, %v888
      %v1146 = vmul.f32 %v893, %v893
      %v1147 = vmul.f32 %v896, %v896
      %v1148 = vmul.f32 %v901, %v901
      %v1149 = vmul.f32 %v904, %v904
      %v1150 = vmul.f32 %v909, %v909
      %v1151 = vmul.f32 %v912, %v912
      %v1152 = vmul.f32 %v917, %v917
      %v1153 = vmul.f32 %v920, %v920
      %v1154 = vmul.f32 %v925, %v925
      %v1155 = vmul.f32 %v928, %v928
      %v1156 = vmul.f32 %v933, %v933
      %v1157 = vmul.f32 %v936, %v936
      %v1158 = vmul.f32 %v941, %v941
      %v1159 = vmul.f32 %v944, %v944
      %v1160 = vmul.f32 %v949, %v949
      %v1161 = vmul.f32 %v952, %v952
      %v1162 = vmul.f32 %v957, %v957
      %v1163 = vmul.f32 %v960, %v960
      %v1164 = vmul.f32 %v965, %v965
      %v1165 = vmul.f32 %v968, %v968
      %v1166 = vmul.f32 %v973, %v973
      %v1167 = vmul.f32 %v976, %v976
      %v1168 = vmul.f32 %v981, %v981
      %v1169 = vmul.f32 %v984, %v984
      %v1170 = vmul.f32 %v989, %v989
      %v1171 = vmul.f32 %v992, %v992
      %v1172 = vmul.f32 %v997, %v997
      %v1173 = vmul.f32 %v1000, %v1000
      %v1174 = vmul.f32 %v1005, %v1005
      %v1175 = vmul.f32 %v1008, %v1008
      %v1176 = vmul.f32 %v1013, %v1013
      %v1177 = vmul.f32 %v1016, %v1016
      %v1178 = vmul.f32 %v1021, %v1021
      %v1179 = vmul.f32 %v1024, %v1024
      %v1180 = vmul.f32 %v1029, %v1029
      %v1181 = vmul.f32 %v1032, %v1032
      %v1182 = vmul.f32 %v1037, %v1037
      %v1183 = vmul.f32 %v1040, %v1040
      %v1184 = vmul.f32 %v1045, %v1045
      %v1185 = vmul.f32 %v1048, %v1048
      %v1186 = vmul.f32 %v1053, %v1053
      %v1187 = vmul.f32 %v1056, %v1056
      %v1188 = vmul.f32 %v1061, %v1061
      %v1189 = vmul.f32 %v1064, %v1064
      %v1190 = vmul.f32 %v1069, %v1069
      %v1191 = vmul.f32 %v1072, %v1072
      %v1192 = vmul.f32 %v1077, %v1077
      %v1193 = vmul.f32 %v1080, %v1080
      %v1194 = vmul.f32 %v1085, %v1085
      %v1195 = vld [vmem:[%s3] sm:$0xff]
      %v1196 = vld [vmem:[%s3 + $0x8] sm:$0xff]
      %v1197 = vld [vmem:[%s3 + $0x10] sm:$0xff]
      %v1198 = vld [vmem:[%s3 + $0x18] sm:$0xff]
      %v1199 = vld [vmem:[%s3 + $0x20] sm:$0xff]
      %v1200 = vld [vmem:[%s3 + $0x28] sm:$0xff]
      %v1201 = vld [vmem:[%s3 + $0x30] sm:$0xff]
      %v1202 = vld [vmem:[%s3 + $0x38] sm:$0xff]
      %v1203 = vld [vmem:[%s3 + $0x40] sm:$0xff]
      %v1204 = vld [vmem:[%s3 + $0x48] sm:$0xff]
      %v1205 = vld [vmem:[%s3 + $0x50] sm:$0xff]
      %v1206 = vld [vmem:[%s3 + $0x58] sm:$0xff]
      %v1207 = vld [vmem:[%s3 + $0x60] sm:$0xff]
      %v1208 = vld [vmem:[%s3 + $0x68] sm:$0xff]
      %v1209 = vld [vmem:[%s3 + $0x70] sm:$0xff]
      %v1210 = vld [vmem:[%s3 + $0x78] sm:$0xff]
      %v1211 = vld [vmem:[%s3 + $0x80] sm:$0xff]
      %v1212 = vld [vmem:[%s3 + $0x88] sm:$0xff]
      %v1213 = vld [vmem:[%s3 + $0x90] sm:$0xff]
      %v1214 = vld [vmem:[%s3 + $0x98] sm:$0xff]
      %v1215 = vld [vmem:[%s3 + $0xa0] sm:$0xff]
      %vm1216 = vcmask 588800
      %v1218 = vsel %vm1216, %v1201, 0
      %v1221 = vsel %vm1216, %v1208, 0
      %v1224 = vsel %vm1216, %v1215, 0
      %1226 = vmatprep.subr.mxu0 0.0
      %1227 = vmatpush1.msra.mxu0 %v1090
      %1228 = vmatprep.subr.mxu0 0.0
      %1229 = vmatpush1.msra.mxu0 %v1091
      %1230 = vmatprep.subr.mxu0 0.0
      %1231 = vmatpush1.msra.mxu0 %v1092
      %1232 = vmatprep.subr.mxu0 0.0
      %1233 = vmatpush1.msra.mxu0 %v1093
      %1234 = vmatprep.subr.mxu0 0.0
      %1235 = vmatpush1.msra.mxu0 %v1094
      %1236 = vmatprep.subr.mxu0 0.0
      %1237 = vmatpush1.msra.mxu0 %v1095
      %1238 = vmatprep.subr.mxu0 0.0
      %1239 = vmatpush1.msra.mxu0 %v1096
      %1240 = vmatprep.subr.mxu0 0.0
      %1241 = vmatpush1.msra.mxu0 %v1097
      %1242 = vmatprep.subr.mxu0 0.0
      %1243 = vmatpush1.msra.mxu0 %v1098
      %1244 = vmatprep.subr.mxu0 0.0
      %1245 = vmatpush1.msra.mxu0 %v1099
      %1246 = vmatprep.subr.mxu0 0.0
      %1247 = vmatpush1.msra.mxu0 %v1100
      %1248 = vmatprep.subr.mxu0 0.0
      %1249 = vmatpush1.msra.mxu0 %v1101
      %1250 = vmatprep.subr.mxu0 0.0
      %1251 = vmatpush1.msra.mxu0 %v1102
      %1252 = vmatprep.subr.mxu0 0.0
      %1253 = vmatpush1.msra.mxu0 %v1103
      %1254 = vmatprep.subr.mxu0 0.0
      %1255 = vmatpush1.msra.mxu0 %v1104
      %1256 = vmatprep.subr.mxu0 0.0
      %1257 = vmatpush1.msra.mxu0 %v1105
      %1258 = vmatprep.subr.mxu0 0.0
      %1259 = vmatpush1.msra.mxu0 %v1106
      %1260 = vmatprep.subr.mxu0 0.0
      %1261 = vmatpush1.msra.mxu0 %v1107
      %1262 = vmatprep.subr.mxu0 0.0
      %1263 = vmatpush1.msra.mxu0 %v1108
      %1264 = vmatprep.subr.mxu0 0.0
      %1265 = vmatpush1.msra.mxu0 %v1109
      %1266 = vmatprep.subr.mxu0 0.0
      %1267 = vmatpush1.msra.mxu0 %v1110
      %1268 = vmatprep.subr.mxu0 0.0
      %1269 = vmatpush1.msra.mxu0 %v1111
      %1270 = vmatprep.subr.mxu0 0.0
      %1271 = vmatpush1.msra.mxu0 %v1112
      %1272 = vmatprep.subr.mxu0 0.0
      %1273 = vmatpush1.msra.mxu0 %v1113
      %1274 = vmatprep.subr.mxu0 0.0
      %1275 = vmatpush1.msra.mxu0 %v1114
      %1276 = vmatprep.subr.mxu0 0.0
      %1277 = vmatpush1.msra.mxu0 %v1115
      %1278 = vmatprep.subr.mxu0 0.0
      %1279 = vmatpush1.msra.mxu0 %v1116
      %1280 = vmatprep.subr.mxu0 0.0
      %1281 = vmatpush1.msra.mxu0 %v1117
      %1282 = vmatprep.subr.mxu0 0.0
      %1283 = vmatpush1.msra.mxu0 %v1118
      %1284 = vmatprep.subr.mxu0 0.0
      %1285 = vmatpush1.msra.mxu0 %v1119
      %1286 = vmatprep.subr.mxu0 0.0
      %1287 = vmatpush1.msra.mxu0 %v1120
      %1288 = vmatprep.subr.mxu0 0.0
      %1289 = vmatpush1.msra.mxu0 %v1121
      %1290 = vmatprep.mubr.f32.mxu0 %v1196
      %1291 = vmatmul.mubr.f32.gmra.mrb[0].mxu0 %v1195
      %v1292 = vpop.f32.mrb[0].mxu0
      %v1293 = vadd.f32 0.0, %v1292
      %v1294 = vpop.f32.mrb[0].mxu0
      %1295 = vmatprep.mubr.f32.mxu0 %v1203
      %1296 = vmatmul.mubr.f32.gmra.mrb[0].mxu0 %v1202
      %v1297 = vpop.f32.mrb[0].mxu0
      %v1298 = vadd.f32 0.0, %v1297
      %v1299 = vpop.f32.mrb[0].mxu0
      %1300 = vmatprep.mubr.f32.mxu0 %v1210
      %1301 = vmatmul.mubr.f32.gmra.mrb[0].mxu0 %v1209
      %v1302 = vpop.f32.mrb[0].mxu0
      %v1303 = vadd.f32 0.0, %v1302
      %v1304 = vpop.f32.mrb[0].mxu0
      %1305 = vdwg.mxu0
      %1306 = vmatprep.subr.mxu0 0.0
      %1307 = vmatpush1.msra.mxu0 %v1122
      %1308 = vmatprep.subr.mxu0 0.0
      %1309 = vmatpush1.msra.mxu0 %v1123
      %1310 = vmatprep.subr.mxu0 0.0
      %1311 = vmatpush1.msra.mxu0 %v1124
      %1312 = vmatprep.subr.mxu0 0.0
      %1313 = vmatpush1.msra.mxu0 %v1125
      %1314 = vmatprep.subr.mxu0 0.0
      %1315 = vmatpush1.msra.mxu0 %v1126
      %1316 = vmatprep.subr.mxu0 0.0
      %1317 = vmatpush1.msra.mxu0 %v1127
      %1318 = vmatprep.subr.mxu0 0.0
      %1319 = vmatpush1.msra.mxu0 %v1128
      %1320 = vmatprep.subr.mxu0 0.0
      %1321 = vmatpush1.msra.mxu0 %v1129
      %1322 = vmatprep.subr.mxu0 0.0
      %1323 = vmatpush1.msra.mxu0 %v1130
      %1324 = vmatprep.subr.mxu0 0.0
      %1325 = vmatpush1.msra.mxu0 %v1131
      %1326 = vmatprep.subr.mxu0 0.0
      %1327 = vmatpush1.msra.mxu0 %v1132
      %1328 = vmatprep.subr.mxu0 0.0
      %1329 = vmatpush1.msra.mxu0 %v1133
      %1330 = vmatprep.subr.mxu0 0.0
      %1331 = vmatpush1.msra.mxu0 %v1134
      %1332 = vmatprep.subr.mxu0 0.0
      %1333 = vmatpush1.msra.mxu0 %v1135
      %1334 = vmatprep.subr.mxu0 0.0
      %1335 = vmatpush1.msra.mxu0 %v1136
      %1336 = vmatprep.subr.mxu0 0.0
      %1337 = vmatpush1.msra.mxu0 %v1137
      %1338 = vmatprep.subr.mxu0 0.0
      %1339 = vmatpush1.msra.mxu0 %v1138
      %1340 = vmatprep.subr.mxu0 0.0
      %1341 = vmatpush1.msra.mxu0 %v1139
      %1342 = vmatprep.subr.mxu0 0.0
      %1343 = vmatpush1.msra.mxu0 %v1140
      %1344 = vmatprep.subr.mxu0 0.0
      %1345 = vmatpush1.msra.mxu0 %v1141
      %1346 = vmatprep.subr.mxu0 0.0
      %1347 = vmatpush1.msra.mxu0 %v1142
      %1348 = vmatprep.subr.mxu0 0.0
      %1349 = vmatpush1.msra.mxu0 %v1143
      %1350 = vmatprep.subr.mxu0 0.0
      %1351 = vmatpush1.msra.mxu0 %v1144
      %1352 = vmatprep.subr.mxu0 0.0
      %1353 = vmatpush1.msra.mxu0 %v1145
      %1354 = vmatprep.subr.mxu0 0.0
      %1355 = vmatpush1.msra.mxu0 %v1146
      %1356 = vmatprep.subr.mxu0 0.0
      %1357 = vmatpush1.msra.mxu0 %v1147
      %1358 = vmatprep.subr.mxu0 0.0
      %1359 = vmatpush1.msra.mxu0 %v1148
      %1360 = vmatprep.subr.mxu0 0.0
      %1361 = vmatpush1.msra.mxu0 %v1149
      %1362 = vmatprep.subr.mxu0 0.0
      %1363 = vmatpush1.msra.mxu0 %v1150
      %1364 = vmatprep.subr.mxu0 0.0
      %1365 = vmatpush1.msra.mxu0 %v1151
      %1366 = vmatprep.subr.mxu0 0.0
      %1367 = vmatpush1.msra.mxu0 %v1152
      %1368 = vmatprep.subr.mxu0 0.0
      %1369 = vmatpush1.msra.mxu0 %v1153
      %1370 = vmatprep.mubr.f32.mxu0 %v1198
      %1371 = vmatmul.mubr.f32.gmra.mrb[0].mxu0 %v1197
      %v1372 = vpop.f32.mrb[0].mxu0
      %v1373 = vadd.f32 %v1293, %v1372
      %v1374 = vpop.f32.mrb[0].mxu0
      %1375 = vmatprep.mubr.f32.mxu0 %v1205
      %1376 = vmatmul.mubr.f32.gmra.mrb[0].mxu0 %v1204
      %v1377 = vpop.f32.mrb[0].mxu0
      %v1378 = vadd.f32 %v1298, %v1377
      %v1379 = vpop.f32.mrb[0].mxu0
      %1380 = vmatprep.mubr.f32.mxu0 %v1212
      %1381 = vmatmul.mubr.f32.gmra.mrb[0].mxu0 %v1211
      %v1382 = vpop.f32.mrb[0].mxu0
      %v1383 = vadd.f32 %v1303, %v1382
      %v1384 = vpop.f32.mrb[0].mxu0
      %1385 = vdwg.mxu0
      %1386 = vmatprep.subr.mxu0 0.0
      %1387 = vmatpush1.msra.mxu0 %v1154
      %1388 = vmatprep.subr.mxu0 0.0
      %1389 = vmatpush1.msra.mxu0 %v1155
      %1390 = vmatprep.subr.mxu0 0.0
      %1391 = vmatpush1.msra.mxu0 %v1156
      %1392 = vmatprep.subr.mxu0 0.0
      %1393 = vmatpush1.msra.mxu0 %v1157
      %1394 = vmatprep.subr.mxu0 0.0
      %1395 = vmatpush1.msra.mxu0 %v1158
      %1396 = vmatprep.subr.mxu0 0.0
      %1397 = vmatpush1.msra.mxu0 %v1159
      %1398 = vmatprep.subr.mxu0 0.0
      %1399 = vmatpush1.msra.mxu0 %v1160
      %1400 = vmatprep.subr.mxu0 0.0
      %1401 = vmatpush1.msra.mxu0 %v1161
      %1402 = vmatprep.subr.mxu0 0.0
      %1403 = vmatpush1.msra.mxu0 %v1162
      %1404 = vmatprep.subr.mxu0 0.0
      %1405 = vmatpush1.msra.mxu0 %v1163
      %1406 = vmatprep.subr.mxu0 0.0
      %1407 = vmatpush1.msra.mxu0 %v1164
      %1408 = vmatprep.subr.mxu0 0.0
      %1409 = vmatpush1.msra.mxu0 %v1165
      %1410 = vmatprep.subr.mxu0 0.0
      %1411 = vmatpush1.msra.mxu0 %v1166
      %1412 = vmatprep.subr.mxu0 0.0
      %1413 = vmatpush1.msra.mxu0 %v1167
      %1414 = vmatprep.subr.mxu0 0.0
      %1415 = vmatpush1.msra.mxu0 %v1168
      %1416 = vmatprep.subr.mxu0 0.0
      %1417 = vmatpush1.msra.mxu0 %v1169
      %1418 = vmatprep.subr.mxu0 0.0
      %1419 = vmatpush1.msra.mxu0 %v1170
      %1420 = vmatprep.subr.mxu0 0.0
      %1421 = vmatpush1.msra.mxu0 %v1171
      %1422 = vmatprep.subr.mxu0 0.0
      %1423 = vmatpush1.msra.mxu0 %v1172
      %1424 = vmatprep.subr.mxu0 0.0
      %1425 = vmatpush1.msra.mxu0 %v1173
      %1426 = vmatprep.subr.mxu0 0.0
      %1427 = vmatpush1.msra.mxu0 %v1174
      %1428 = vmatprep.subr.mxu0 0.0
      %1429 = vmatpush1.msra.mxu0 %v1175
      %1430 = vmatprep.subr.mxu0 0.0
      %1431 = vmatpush1.msra.mxu0 %v1176
      %1432 = vmatprep.subr.mxu0 0.0
      %1433 = vmatpush1.msra.mxu0 %v1177
      %1434 = vmatprep.subr.mxu0 0.0
      %1435 = vmatpush1.msra.mxu0 %v1178
      %1436 = vmatprep.subr.mxu0 0.0
      %1437 = vmatpush1.msra.mxu0 %v1179
      %1438 = vmatprep.subr.mxu0 0.0
      %1439 = vmatpush1.msra.mxu0 %v1180
      %1440 = vmatprep.subr.mxu0 0.0
      %1441 = vmatpush1.msra.mxu0 %v1181
      %1442 = vmatprep.subr.mxu0 0.0
      %1443 = vmatpush1.msra.mxu0 %v1182
      %1444 = vmatprep.subr.mxu0 0.0
      %1445 = vmatpush1.msra.mxu0 %v1183
      %1446 = vmatprep.subr.mxu0 0.0
      %1447 = vmatpush1.msra.mxu0 %v1184
      %1448 = vmatprep.subr.mxu0 0.0
      %1449 = vmatpush1.msra.mxu0 %v1185
      %1450 = vmatprep.mubr.f32.mxu0 %v1200
      %1451 = vmatmul.mubr.f32.gmra.mrb[0].mxu0 %v1199
      %v1452 = vpop.f32.mrb[0].mxu0
      %v1453 = vadd.f32 %v1373, %v1452
      %v1454 = vpop.f32.mrb[0].mxu0
      %1455 = vmatprep.mubr.f32.mxu0 %v1207
      %1456 = vmatmul.mubr.f32.gmra.mrb[0].mxu0 %v1206
      %v1457 = vpop.f32.mrb[0].mxu0
      %v1458 = vadd.f32 %v1378, %v1457
      %v1459 = vpop.f32.mrb[0].mxu0
      %1460 = vmatprep.mubr.f32.mxu0 %v1214
      %1461 = vmatmul.mubr.f32.gmra.mrb[0].mxu0 %v1213
      %v1462 = vpop.f32.mrb[0].mxu0
      %v1463 = vadd.f32 %v1383, %v1462
      %v1464 = vpop.f32.mrb[0].mxu0
      %1465 = vdwg.mxu0
      %1466 = vmatprep.subr.mxu0 0.0
      %1467 = vmatpush1.msra.mxu0 %v1186
      %1468 = vmatprep.subr.mxu0 0.0
      %1469 = vmatpush1.msra.mxu0 %v1187
      %1470 = vmatprep.subr.mxu0 0.0
      %1471 = vmatpush1.msra.mxu0 %v1188
      %1472 = vmatprep.subr.mxu0 0.0
      %1473 = vmatpush1.msra.mxu0 %v1189
      %1474 = vmatprep.subr.mxu0 0.0
      %1475 = vmatpush1.msra.mxu0 %v1190
      %1476 = vmatprep.subr.mxu0 0.0
      %1477 = vmatpush1.msra.mxu0 %v1191
      %1478 = vmatprep.subr.mxu0 0.0
      %1479 = vmatpush1.msra.mxu0 %v1192
      %1480 = vmatprep.subr.mxu0 0.0
      %1481 = vmatpush1.msra.mxu0 %v1193
      %1482 = vmatprep.subr.mxu0 0.0
      %1483 = vmatpush1.msra.mxu0 %v1194
      %1484 = vmatprep.subr.mxu0 0.0
      %1485 = vmatpush1.msra.mxu0 0.0
      %1486 = vmatprep.subr.mxu0 0.0
      %1487 = vmatpush1.msra.mxu0 0.0
      %1488 = vmatprep.subr.mxu0 0.0
      %1489 = vmatpush1.msra.mxu0 0.0
      %1490 = vmatprep.subr.mxu0 0.0
      %1491 = vmatpush1.msra.mxu0 0.0
      %1492 = vmatprep.subr.mxu0 0.0
      %1493 = vmatpush1.msra.mxu0 0.0
      %1494 = vmatprep.subr.mxu0 0.0
      %1495 = vmatpush1.msra.mxu0 0.0
      %1496 = vmatprep.subr.mxu0 0.0
      %1497 = vmatpush1.msra.mxu0 0.0
      %1498 = vmatprep.subr.mxu0 0.0
      %1499 = vmatpush1.msra.mxu0 0.0
      %1500 = vmatprep.subr.mxu0 0.0
      %1501 = vmatpush1.msra.mxu0 0.0
      %1502 = vmatprep.subr.mxu0 0.0
      %1503 = vmatpush1.msra.mxu0 0.0
      %1504 = vmatprep.subr.mxu0 0.0
      %1505 = vmatpush1.msra.mxu0 0.0
      %1506 = vmatprep.subr.mxu0 0.0
      %1507 = vmatpush1.msra.mxu0 0.0
      %1508 = vmatprep.subr.mxu0 0.0
      %1509 = vmatpush1.msra.mxu0 0.0
      %1510 = vmatprep.subr.mxu0 0.0
      %1511 = vmatpush1.msra.mxu0 0.0
      %1512 = vmatprep.subr.mxu0 0.0
      %1513 = vmatpush1.msra.mxu0 0.0
      %1514 = vmatprep.subr.mxu0 0.0
      %1515 = vmatpush1.msra.mxu0 0.0
      %1516 = vmatprep.subr.mxu0 0.0
      %1517 = vmatpush1.msra.mxu0 0.0
      %1518 = vmatprep.subr.mxu0 0.0
      %1519 = vmatpush1.msra.mxu0 0.0
      %1520 = vmatprep.subr.mxu0 0.0
      %1521 = vmatpush1.msra.mxu0 0.0
      %1522 = vmatprep.subr.mxu0 0.0
      %1523 = vmatpush1.msra.mxu0 0.0
      %1524 = vmatprep.subr.mxu0 0.0
      %1525 = vmatpush1.msra.mxu0 0.0
      %1526 = vmatprep.subr.mxu0 0.0
      %1527 = vmatpush1.msra.mxu0 0.0
      %1528 = vmatprep.subr.mxu0 0.0
      %1529 = vmatpush1.msra.mxu0 0.0
      %1530 = vmatprep.mubr.f32.mxu0 0.0
      %1531 = vmatmul.mubr.f32.gmra.mrb[0].mxu0 %v1218
      %v1532 = vpop.f32.mrb[0].mxu0
      %v1533 = vadd.f32 %v1453, %v1532
      %v1534 = vpop.f32.mrb[0].mxu0
      %1535 = vmatprep.mubr.f32.mxu0 0.0
      %1536 = vmatmul.mubr.f32.gmra.mrb[0].mxu0 %v1221
      %v1537 = vpop.f32.mrb[0].mxu0
      %v1538 = vadd.f32 %v1458, %v1537
      %v1539 = vpop.f32.mrb[0].mxu0
      %1540 = vmatprep.mubr.f32.mxu0 0.0
      %1541 = vmatmul.mubr.f32.gmra.mrb[0].mxu0 %v1224
      %v1542 = vpop.f32.mrb[0].mxu0
      %v1543 = vadd.f32 %v1463, %v1542
      %v1544 = vpop.f32.mrb[0].mxu0
      %1545 = vdwg.mxu0
      %v1546 = vmax.f32 %v1533, 1e-06
      %v1547 = vmax.f32 %v1538, 1e-06
      %v1548 = vmax.f32 %v1543, 1e-06
      %v1549 = vlog2.pop %v1546
      %v1550 = vmul.f32 %v1549, 0.6931472
      %v1551 = vlog2.pop %v1547
      %v1552 = vmul.f32 %v1551, 0.6931472
      %v1553 = vlog2.pop %v1548
      %v1554 = vmul.f32 %v1553, 0.6931472
      %1556 = vrot.lane.b32.xlu0 %v1552, 40
      %v1557 = vpop.permute.xlu0 %1556
      %1560 = vrot.lane.b32.xlu0 %v1554, 80
      %v1561 = vpop.permute.xlu0 %1560
      %vm1563 = vcmask 326656
      %v1564 = vsel %vm1563, %v1550, %v1557
      %vm1565 = vcmask 654336
      %v1566 = vsel %vm1565, %v1564, %v1561
      %v1567 = vld [vmem:[%s4] sm:$0xff]
      %v1568 = vld [vmem:[%s4 + $0x8] sm:$0xff]
      %v1569 = vld [vmem:[%s4 + $0x10] sm:$0xff]
      %v1570 = vld [vmem:[%s4 + $0x18] sm:$0xff]
      %v1571 = vld [vmem:[%s4 + $0x20] sm:$0xff]
      %v1572 = vld [vmem:[%s4 + $0x28] sm:$0xff]
      %v1573 = vld [vmem:[%s4 + $0x30] sm:$0xff]
      %v1574 = vld [vmem:[%s4 + $0x38] sm:$0xff]
      %v1575 = vld [vmem:[%s4 + $0x40] sm:$0xff]
      %v1576 = vld [vmem:[%s4 + $0x48] sm:$0xff]
      %v1577 = vld [vmem:[%s4 + $0x50] sm:$0xff]
      %v1578 = vld [vmem:[%s4 + $0x58] sm:$0xff]
      %v1579 = vld [vmem:[%s4 + $0x60] sm:$0xff]
      %v1580 = vld [vmem:[%s4 + $0x68] sm:$0xff]
      %v1581 = vld [vmem:[%s4 + $0x70] sm:$0xff]
      %v1582 = vld [vmem:[%s5] sm:$0x1]
      %v1584 = vlaneseq
      %v1585 = vshrl.u32 %v1584, 7
      %v1586 = vsub.s32 0, %v1585
      %v1587 = vrot.slane %v1582, %v1586
      %vm1589 = vcmask 982016
      %v1591 = vsel %vm1589, %v1566, 0
      %1593 = vmatprep.subr.mxu0 0.0
      %1594 = vmatpush1.msra.mxu0 %v1567
      %1595 = vmatprep.subr.mxu0 0.0
      %1596 = vmatpush1.msra.mxu0 %v1568
      %1597 = vmatprep.subr.mxu0 0.0
      %1598 = vmatpush1.msra.mxu0 %v1569
      %1599 = vmatprep.subr.mxu0 0.0
      %1600 = vmatpush1.msra.mxu0 %v1570
      %1601 = vmatprep.subr.mxu0 0.0
      %1602 = vmatpush1.msra.mxu0 %v1571
      %1603 = vmatprep.subr.mxu0 0.0
      %1604 = vmatpush1.msra.mxu0 %v1572
      %1605 = vmatprep.subr.mxu0 0.0
      %1606 = vmatpush1.msra.mxu0 %v1573
      %1607 = vmatprep.subr.mxu0 0.0
      %1608 = vmatpush1.msra.mxu0 %v1574
      %1609 = vmatprep.subr.mxu0 0.0
      %1610 = vmatpush1.msra.mxu0 %v1575
      %1611 = vmatprep.subr.mxu0 0.0
      %1612 = vmatpush1.msra.mxu0 %v1576
      %1613 = vmatprep.subr.mxu0 0.0
      %1614 = vmatpush1.msra.mxu0 %v1577
      %1615 = vmatprep.subr.mxu0 0.0
      %1616 = vmatpush1.msra.mxu0 %v1578
      %1617 = vmatprep.subr.mxu0 0.0
      %1618 = vmatpush1.msra.mxu0 %v1579
      %1619 = vmatprep.subr.mxu0 0.0
      %1620 = vmatpush1.msra.mxu0 %v1580
      %1621 = vmatprep.subr.mxu0 0.0
      %1622 = vmatpush1.msra.mxu0 %v1581
      %1623 = vmatprep.subr.mxu0 0.0
      %1624 = vmatpush1.msra.mxu0 0.0
      %1625 = vmatprep.subr.mxu0 0.0
      %1626 = vmatpush1.msra.mxu0 0.0
      %1627 = vmatprep.subr.mxu0 0.0
      %1628 = vmatpush1.msra.mxu0 0.0
      %1629 = vmatprep.subr.mxu0 0.0
      %1630 = vmatpush1.msra.mxu0 0.0
      %1631 = vmatprep.subr.mxu0 0.0
      %1632 = vmatpush1.msra.mxu0 0.0
      %1633 = vmatprep.subr.mxu0 0.0
      %1634 = vmatpush1.msra.mxu0 0.0
      %1635 = vmatprep.subr.mxu0 0.0
      %1636 = vmatpush1.msra.mxu0 0.0
      %1637 = vmatprep.subr.mxu0 0.0
      %1638 = vmatpush1.msra.mxu0 0.0
      %1639 = vmatprep.subr.mxu0 0.0
      %1640 = vmatpush1.msra.mxu0 0.0
      %1641 = vmatprep.subr.mxu0 0.0
      %1642 = vmatpush1.msra.mxu0 0.0
      %1643 = vmatprep.subr.mxu0 0.0
      %1644 = vmatpush1.msra.mxu0 0.0
      %1645 = vmatprep.subr.mxu0 0.0
      %1646 = vmatpush1.msra.mxu0 0.0
      %1647 = vmatprep.subr.mxu0 0.0
      %1648 = vmatpush1.msra.mxu0 0.0
      %1649 = vmatprep.subr.mxu0 0.0
      %1650 = vmatpush1.msra.mxu0 0.0
      %1651 = vmatprep.subr.mxu0 0.0
      %1652 = vmatpush1.msra.mxu0 0.0
      %1653 = vmatprep.subr.mxu0 0.0
      %1654 = vmatpush1.msra.mxu0 0.0
      %1655 = vmatprep.subr.mxu0 0.0
      %1656 = vmatpush1.msra.mxu0 0.0
      %1657 = vmatprep.mubr.f32.mxu0 0.0
      %1658 = vmatmul.mubr.f32.gmra.mrb[0].mxu0 %v1591
      %v1659 = vpop.f32.mrb[0].mxu0
      %v1660 = vadd.f32 %v1587, %v1659
      %v1661 = vpop.f32.mrb[0].mxu0
      %1662 = vdwg.mxu0
      %vm1663 = vcmask 31744
      %v1664 = vsel %vm1663, %v1660, -inf
      %1665 = vmax.xlane.f32.xlu0 %v1664
      %v1666 = vpop.xlane.xlu0 %1665
      %v1667 = vsub.f32 %v1660, %v1666
      %v1668 = vmul.f32 %v1667, 1.442695
      %v1669 = vpow.pop %v1668
      %v1670 = vsel %vm1663, %v1669, 0.0
      %1671 = vadd.xlane.f32.xlu0 %v1670
      %v1672 = vpop.xlane.xlu0 %1671
      %v1673 = vlog2.pop %v1672
      %v1674 = vmul.f32 %v1673, 0.6931472
      %v1675 = vadd.f32 %v1674, %v1666
      %v1676 = vsub.f32 %v1660, %v1675
      %1677 = vst.msk [vmem:[%s251] sm:$0xff] %vm1663, %v1676
      %p1678 = scmp.lt.s32.totalorder %s17, 1
      %s1679 = scalar_select %p1678, %s17, 1
      %s1680 = smul.addr %s1679, 8
      %s1681 = scalar_lea.vmem %s6, %s1680
      // Predicated region
      $region45: #{tpu_custom_call.1} parent=43 // pred_check
        %p1682 = pneg %p166
      $region46: #{tpu_custom_call.1} parent=43 // pred_check_branch
        %1684 = sbr.rel (%p1682) target = $region48
      $region47: #{tpu_custom_call.1} parent=43 // pred_region
        _
      $region48: #{tpu_custom_call.1} parent=43 // pred_fallthru
        _
    $region44: #{tpu_custom_call.1} parent=5 // pred_fallthru
      _
    %p1685 = scmp.le.s32.totalorder 2, %s12
    // Predicated region
    $region49: #{tpu_custom_call.1} parent=5 // pred_check
      %p1686 = pneg %p1685
    $region50: #{tpu_custom_call.1} parent=5 // pred_check_branch
      %1688 = sbr.rel (%p1686) target = $region52
    $region51: #{tpu_custom_call.1} parent=5 // pred_region
      %s1689 = ssub.s32 %s12, 2
      // Predicated region
      $region53: #{tpu_custom_call.1} parent=51 // pred_check
        %p1690 = pneg %p172
      $region54: #{tpu_custom_call.1} parent=51 // pred_check_branch
        %1692 = sbr.rel (%p1690) target = $region56
      $region55: #{tpu_custom_call.1} parent=51 // pred_region
        %p1693 = scmp.lt.s32.totalorder %s18, 1
        %s1694 = scalar_select %p1693, %s18, 1
        %s1695 = smul.addr %s1694, 8
        %s1696 = scalar_lea.vmem %s6, %s1695
      $region56: #{tpu_custom_call.1} parent=51 // pred_fallthru
        _
    $region52: #{tpu_custom_call.1} parent=5 // pred_fallthru
      _
  $region6: #{tpu_custom_call.1} parent=0 // loop_footer
    %s16 = sadd.s32 1, %s12
  $region7: #{tpu_custom_call.1} parent=0 // loop_footer_branch
    %11 = sbr.rel target = $region3
  $region8: #{tpu_custom_call.1} parent=0 // loop_exit
    _

</llo_original>
